<compile_context>
chip_gen: v5e
topology: v5e:2x2
jax: 0.10.0
libtpu: 0.0.40
codegen_flags: <defaults>
</compile_context>

<pallas_src>
import jax
import jax.numpy as jnp
from jax.experimental import pallas as pl
from jax.experimental.pallas import tpu as pltpu

IMG_FEATS = 784          # 28*28
EMB_FEATS = 10
EMB_PAD = 16             # embedding features padded once to a sublane multiple
H1, H2, OUT = 512, 256, 1
OUT_LANES = 128          # lane-dense output slab width (unmasked 128-lane vst)
TB_MAX = 1024            # max batch tile (rows)
SINGLE_TILE_MAX = 256    # below this, one tile (per review: split only if B > 256)


def _round_up(n, m):
    return ((n + m - 1) // m) * m


def _pick_tile(b):
    """Batch tile size: big tiles to amortize per-step overhead, >=2 (even)
    tiles when B > 256 so v7x's two TensorCores both get work."""
    if b <= SINGLE_TILE_MAX:
        return b                      # single tile == full array dims (always legal)
    n_tiles = max(2, pl.cdiv(b, TB_MAX))
    n_tiles += n_tiles % 2            # even tile count balances the 2 TCs
    # multiple of 16 keeps f32-in / bf16-out blocks tile-aligned
    return _round_up(pl.cdiv(b, n_tiles), 16)


def _disc_kernel(x_ref, c_ref, w1i_ref, w1e_ref, b1_ref,
                 w2_ref, b2_ref, w3_ref, b3_ref, o_ref):
    # x_ref: (tb, 784) f32 or bf16, c_ref: (tb, 16) f32 (zero-padded embedding)
    # w1i: (784,512) bf16, w1e: (16,512) bf16, w2: (512,256) bf16
    # b1: (1,512) f32, b2: (1,256) f32, w3: (1,256) f32, b3: (1,1) f32
    x = x_ref[...].astype(jnp.bfloat16)      # no-op if the producer fed bf16
    c = c_ref[...].astype(jnp.bfloat16)

    # Layer 1 (split-K: image part + embedding part), f32 accumulation on MXU.
    h1 = jnp.dot(x, w1i_ref[...], preferred_element_type=jnp.float32)
    h1 = h1 + jnp.dot(c, w1e_ref[...], preferred_element_type=jnp.float32)
    h1 = jnp.maximum(h1 + b1_ref[...], 0.0)          # bias/ReLU in f32 (v5e VPU)

    # Layer 2.
    h2 = jnp.dot(h1.astype(jnp.bfloat16), w2_ref[...],
                 preferred_element_type=jnp.float32)
    h2 = jnp.maximum(h2 + b2_ref[...], 0.0)

    # Layer 3 (256 -> 1) on VPU + XLU lane-reduce instead of an N=1 MXU pass.
    logits = jnp.sum(h2 * w3_ref[...], axis=-1, keepdims=True) + b3_ref[...]
    # sigmoid: exp on EUP, reciprocal on EUP (approx) -> no f32 divide on VPU.
    sig = pl.reciprocal(1.0 + jnp.exp(-logits), approx=True)

    # Lane-dense bf16 store: broadcast the (tb,1) result across 128 lanes.
    o_ref[...] = jnp.broadcast_to(sig.astype(o_ref.dtype), o_ref.shape)


def _mlp_pallas(x_flat, c, kparams, tb):
    b = x_flat.shape[0]
    w1i, w1e, b1, w2, b2, w3, b3 = kparams
    grid = (pl.cdiv(b, tb),)                 # ragged last tile handled by Pallas

    const = lambda i: (0, 0)
    batch = lambda i: (i, 0)

    flops = 2 * b * (IMG_FEATS * H1 + EMB_PAD * H1 + H1 * H2 + H2)
    bytes_accessed = (x_flat.size * x_flat.dtype.itemsize
                      + c.size * 4
                      + b * OUT_LANES * 2
                      + (w1i.size + w1e.size + w2.size) * 2
                      + (b1.size + b2.size + w3.size + b3.size) * 4)

    return pl.pallas_call(
        _disc_kernel,
        out_shape=jax.ShapeDtypeStruct((b, OUT_LANES), jnp.bfloat16),
        grid_spec=pltpu.PrefetchScalarGridSpec(
            num_scalar_prefetch=0,
            grid=grid,
            in_specs=[
                pl.BlockSpec((tb, IMG_FEATS), batch),      # x tile
                pl.BlockSpec((tb, EMB_PAD), batch),        # embedding tile
                pl.BlockSpec((IMG_FEATS, H1), const),      # W1 image part (resident)
                pl.BlockSpec((EMB_PAD, H1), const),        # W1 embedding part
                pl.BlockSpec((1, H1), const),              # b1
                pl.BlockSpec((H1, H2), const),             # W2
                pl.BlockSpec((1, H2), const),              # b2
                pl.BlockSpec((1, H2), const),              # W3 as a row
                pl.BlockSpec((1, 1), const),               # b3
            ],
            out_specs=pl.BlockSpec((tb, OUT_LANES), batch),
        ),
        compiler_params=pltpu.CompilerParams(
            dimension_semantics=("parallel",),
            vmem_limit_bytes=32 * 1024 * 1024),
        cost_estimate=pl.CostEstimate(flops=flops,
                                      transcendentals=2 * b,
                                      bytes_accessed=bytes_accessed),
    )(x_flat, c, w1i, w1e, b1, w2, b2, w3, b3)


def init_params(key):
    """Raw f32 parameters matching the PyTorch module shapes."""
    ks = jax.random.split(key, 7)
    emb = jax.random.normal(ks[0], (10, EMB_FEATS), jnp.float32)      # nn.Embedding(10, 10)
    # nn.Linear(in, out) stored directly as (in, out) so the math is x @ W + b.
    w1 = jax.random.normal(ks[1], (IMG_FEATS + EMB_FEATS, H1), jnp.float32) * 0.05
    b1 = jax.random.normal(ks[2], (1, H1), jnp.float32) * 0.05
    w2 = jax.random.normal(ks[3], (H1, H2), jnp.float32) * 0.05
    b2 = jax.random.normal(ks[4], (1, H2), jnp.float32) * 0.05
    w3 = jax.random.normal(ks[5], (H2, OUT), jnp.float32) * 0.05
    b3 = jax.random.normal(ks[6], (1, OUT), jnp.float32) * 0.05
    return emb, (w1, b1, w2, b2, w3, b3)


def prepare_params(emb, params):
    """One-time (outside the jitted hot path): split/pad W1, cast weights to bf16,
    pad the embedding table so the gather output is already kernel-shaped."""
    w1, b1, w2, b2, w3, b3 = params
    w1_img = w1[:IMG_FEATS].astype(jnp.bfloat16)                               # (784, 512)
    w1_emb = jnp.pad(w1[IMG_FEATS:],
                     ((0, EMB_PAD - EMB_FEATS), (0, 0))).astype(jnp.bfloat16)  # (16, 512)
    emb_p = jnp.pad(emb, ((0, 0), (0, EMB_PAD - EMB_FEATS)))                   # (10, 16) f32
    w2_bf = w2.astype(jnp.bfloat16)                                            # (512, 256)
    w3_row = w3.reshape(1, H2).astype(jnp.float32)                             # (1, 256)
    b3_ = b3.reshape(1, 1).astype(jnp.float32)
    kparams = (w1_img, w1_emb, b1.astype(jnp.float32), w2_bf,
               b2.astype(jnp.float32), w3_row, b3_)
    return emb_p, kparams


@jax.jit
def discriminator_forward(x, labels, emb_p, kparams):
    b = x.shape[0]
    c = jnp.take(emb_p, labels, axis=0)           # (B, 16); padded cols are 0
    x_flat = x.reshape(b, IMG_FEATS)              # x.view(B, 784), dtype preserved
    tb = _pick_tile(b)                            # no batch padding / no copies
    out = _mlp_pallas(x_flat, c, kparams, tb)     # (B, 128) bf16 lane-dense slab
    return out[:, :OUT].astype(jnp.float32)       # (B, 1)


def reference_forward(x, labels, emb, params):
    w1, b1, w2, b2, w3, b3 = params
    b = x.shape[0]
    c = emb[labels]
    h = jnp.concatenate([x.reshape(b, IMG_FEATS).astype(jnp.float32), c], axis=1)
    h = jnp.maximum(h @ w1 + b1, 0.0)
    h = jnp.maximum(h @ w2 + b2, 0.0)
    return jax.nn.sigmoid(h @ w3 + b3)


if __name__ == "__main__":
    key = jax.random.PRNGKey(0)
    k_x1, k_l1, k_x2, k_l2, k_p = jax.random.split(key, 5)

    emb, params = init_params(k_p)
    emb_p, kparams = prepare_params(emb, params)             # one-time prep (bf16, pads)

    # 1) Small batch: single tile, block shapes == full array dims.
    B1 = 8
    x1 = jax.random.normal(k_x1, (B1, 1, 28, 28), jnp.float32)
    l1 = jax.random.randint(k_l1, (B1,), 0, 10, jnp.int32)
    out1 = jax.block_until_ready(discriminator_forward(x1, l1, emb_p, kparams))
    ref1 = reference_forward(x1, l1, emb, params)
    assert out1.shape == (B1, 1), out1.shape
    assert jnp.allclose(out1, ref1, atol=3e-2, rtol=0.0), (
        f"small batch max abs diff {jnp.max(jnp.abs(out1 - ref1))}")

    # 2) Larger batch (>256): 2 parallel tiles, ragged last tile, no jnp.pad.
    B2 = 300
    x2 = jax.random.normal(k_x2, (B2, 1, 28, 28), jnp.float32)
    l2 = jax.random.randint(k_l2, (B2,), 0, 10, jnp.int32)
    out2 = jax.block_until_ready(discriminator_forward(x2, l2, emb_p, kparams))
    ref2 = reference_forward(x2, l2, emb, params)
    assert out2.shape == (B2, 1), out2.shape
    assert jnp.allclose(out2, ref2, atol=3e-2, rtol=0.0), (
        f"large batch max abs diff {jnp.max(jnp.abs(out2 - ref2))}")

    # 3) Producer-side bf16 images (v6e HBM-read saving): same kernel, fed through.
    out3 = jax.block_until_ready(
        discriminator_forward(x2.astype(jnp.bfloat16), l2, emb_p, kparams))
    assert jnp.allclose(out3, ref2, atol=3e-2, rtol=0.0), (
        f"bf16-input max abs diff {jnp.max(jnp.abs(out3 - ref2))}")

    print("KERNEL_OK")
</pallas_src>

<mosaic_0001>
module attributes {stable_mosaic.version = 11 : i64} {
  func.func @_disc_kernel(%arg0: i32, %arg1: memref<8x784xf32, #tpu.memory_space<vmem>>, %arg2: memref<8x16xf32, #tpu.memory_space<vmem>>, %arg3: memref<784x512xbf16, #tpu.memory_space<vmem>>, %arg4: memref<16x512xbf16, #tpu.memory_space<vmem>>, %arg5: memref<1x512xf32, #tpu.memory_space<vmem>>, %arg6: memref<512x256xbf16, #tpu.memory_space<vmem>>, %arg7: memref<1x256xf32, #tpu.memory_space<vmem>>, %arg8: memref<1x256xf32, #tpu.memory_space<vmem>>, %arg9: memref<1x1xf32, #tpu.memory_space<vmem>>, %arg10: memref<8x128xbf16, #tpu.memory_space<vmem>>) attributes {dimension_semantics = [#tpu.dimension_semantics<parallel>], iteration_bounds = array<i64: 1>, scalar_prefetch = 0 : i64, scratch_operands = 0 : i64, tpu.core_type = #tpu.core_type<tc>, window_params = [{transform_indices = @transform_0, window_bounds = array<i64: 8, 784>}, {transform_indices = @transform_1, window_bounds = array<i64: 8, 16>}, {pipeline_mode = #tpu.pipeline_mode<synchronous>, transform_indices = @transform_2, window_bounds = array<i64: 784, 512>}, {pipeline_mode = #tpu.pipeline_mode<synchronous>, transform_indices = @transform_3, window_bounds = array<i64: 16, 512>}, {pipeline_mode = #tpu.pipeline_mode<synchronous>, transform_indices = @transform_4, window_bounds = array<i64: 1, 512>}, {pipeline_mode = #tpu.pipeline_mode<synchronous>, transform_indices = @transform_5, window_bounds = array<i64: 512, 256>}, {pipeline_mode = #tpu.pipeline_mode<synchronous>, transform_indices = @transform_6, window_bounds = array<i64: 1, 256>}, {pipeline_mode = #tpu.pipeline_mode<synchronous>, transform_indices = @transform_7, window_bounds = array<i64: 1, 256>}, {pipeline_mode = #tpu.pipeline_mode<synchronous>, transform_indices = @transform_8, window_bounds = array<i64: 1, 1>}, {transform_indices = @transform_9, window_bounds = array<i64: 8, 128>}]} {
    %c0 = arith.constant 0 : index
    %c0_0 = arith.constant 0 : index
    %0 = vector.load %arg1[%c0, %c0_0] : memref<8x784xf32, #tpu.memory_space<vmem>>, vector<8x784xf32>
    %1 = arith.truncf %0 : vector<8x784xf32> to vector<8x784xbf16>
    %c0_1 = arith.constant 0 : index
    %c0_2 = arith.constant 0 : index
    %2 = vector.load %arg2[%c0_1, %c0_2] : memref<8x16xf32, #tpu.memory_space<vmem>>, vector<8x16xf32>
    %3 = arith.truncf %2 : vector<8x16xf32> to vector<8x16xbf16>
    %c0_3 = arith.constant 0 : index
    %c0_4 = arith.constant 0 : index
    %4 = vector.load %arg3[%c0_3, %c0_4] : memref<784x512xbf16, #tpu.memory_space<vmem>>, vector<784x512xbf16>
    %cst = arith.constant dense<0.000000e+00> : vector<8x512xf32>
    %5 = tpu.matmul %1, %4, %cst {dimension_numbers = #tpu.dot_dimension_numbers<[1], [0], [0], [1], [0, 0, 1, 1], [], []>} : vector<8x784xbf16>, vector<784x512xbf16>, vector<8x512xf32> -> vector<8x512xf32>
    %c0_5 = arith.constant 0 : index
    %c0_6 = arith.constant 0 : index
    %6 = vector.load %arg4[%c0_5, %c0_6] : memref<16x512xbf16, #tpu.memory_space<vmem>>, vector<16x512xbf16>
    %cst_7 = arith.constant dense<0.000000e+00> : vector<8x512xf32>
    %7 = tpu.matmul %3, %6, %cst_7 {dimension_numbers = #tpu.dot_dimension_numbers<[1], [0], [0], [1], [0, 0, 1, 1], [], []>} : vector<8x16xbf16>, vector<16x512xbf16>, vector<8x512xf32> -> vector<8x512xf32>
    %8 = arith.addf %5, %7 : vector<8x512xf32>
    %c0_8 = arith.constant 0 : index
    %c0_9 = arith.constant 0 : index
    %9 = vector.load %arg5[%c0_8, %c0_9] : memref<1x512xf32, #tpu.memory_space<vmem>>, vector<1x512xf32>
    %10 = vector.broadcast %9 : vector<1x512xf32> to vector<8x512xf32>
    %11 = arith.addf %8, %10 : vector<8x512xf32>
    %cst_10 = arith.constant 0.000000e+00 : f32
    %12 = vector.broadcast %cst_10 : f32 to vector<8x512xf32>
    %13 = arith.maximumf %11, %12 : vector<8x512xf32>
    %14 = arith.truncf %13 : vector<8x512xf32> to vector<8x512xbf16>
    %c0_11 = arith.constant 0 : index
    %c0_12 = arith.constant 0 : index
    %15 = vector.load %arg6[%c0_11, %c0_12] : memref<512x256xbf16, #tpu.memory_space<vmem>>, vector<512x256xbf16>
    %cst_13 = arith.constant dense<0.000000e+00> : vector<8x256xf32>
    %16 = tpu.matmul %14, %15, %cst_13 {dimension_numbers = #tpu.dot_dimension_numbers<[1], [0], [0], [1], [0, 0, 1, 1], [], []>} : vector<8x512xbf16>, vector<512x256xbf16>, vector<8x256xf32> -> vector<8x256xf32>
    %c0_14 = arith.constant 0 : index
    %c0_15 = arith.constant 0 : index
    %17 = vector.load %arg7[%c0_14, %c0_15] : memref<1x256xf32, #tpu.memory_space<vmem>>, vector<1x256xf32>
    %18 = vector.broadcast %17 : vector<1x256xf32> to vector<8x256xf32>
    %19 = arith.addf %16, %18 : vector<8x256xf32>
    %cst_16 = arith.constant 0.000000e+00 : f32
    %20 = vector.broadcast %cst_16 : f32 to vector<8x256xf32>
    %21 = arith.maximumf %19, %20 : vector<8x256xf32>
    %c0_17 = arith.constant 0 : index
    %c0_18 = arith.constant 0 : index
    %22 = vector.load %arg8[%c0_17, %c0_18] : memref<1x256xf32, #tpu.memory_space<vmem>>, vector<1x256xf32>
    %23 = vector.broadcast %22 : vector<1x256xf32> to vector<8x256xf32>
    %24 = arith.mulf %21, %23 : vector<8x256xf32>
    %cst_19 = arith.constant dense<0.000000e+00> : vector<8xf32>
    %25 = vector.multi_reduction <add>, %24, %cst_19 [1] : vector<8x256xf32> to vector<8xf32>
    %26 = vector.shape_cast %25 : vector<8xf32> to vector<8x1xf32>
    %c0_20 = arith.constant 0 : index
    %c0_21 = arith.constant 0 : index
    %27 = vector.load %arg9[%c0_20, %c0_21] : memref<1x1xf32, #tpu.memory_space<vmem>>, vector<1x1xf32>
    %28 = vector.broadcast %27 : vector<1x1xf32> to vector<8x1xf32>
    %29 = arith.addf %26, %28 : vector<8x1xf32>
    %cst_22 = arith.constant 0.000000e+00 : f32
    %30 = vector.broadcast %cst_22 : f32 to vector<8x1xf32>
    %31 = arith.subf %30, %29 : vector<8x1xf32>
    %32 = math.exp %31 : vector<8x1xf32>
    %cst_23 = arith.constant 1.000000e+00 : f32
    %33 = vector.broadcast %cst_23 : f32 to vector<8x1xf32>
    %34 = arith.addf %33, %32 : vector<8x1xf32>
    %35 = tpu.reciprocal %34 {approx = true} : vector<8x1xf32> -> vector<8x1xf32>
    %36 = arith.truncf %35 : vector<8x1xf32> to vector<8x1xbf16>
    %37 = vector.shape_cast %36 : vector<8x1xbf16> to vector<8x1xbf16>
    %38 = vector.broadcast %37 : vector<8x1xbf16> to vector<8x128xbf16>
    %c0_24 = arith.constant 0 : index
    %c0_25 = arith.constant 0 : index
    %39 = vector.load %arg10[%c0_24, %c0_25] : memref<8x128xbf16, #tpu.memory_space<vmem>>, vector<8x128xbf16>
    tpu.vector_store %arg10[%c0_24, %c0_25], %38 {strides = array<i32>} : memref<8x128xbf16, #tpu.memory_space<vmem>>, vector<8x128xbf16>,
    return
  }
  func.func @transform_0(%arg0: i32) -> (i32, i32) {
    %c0_i32 = arith.constant 0 : i32
    %c0_i32_0 = arith.constant 0 : i32
    return %arg0, %c0_i32 : i32, i32
  }
  func.func @transform_1(%arg0: i32) -> (i32, i32) {
    %c0_i32 = arith.constant 0 : i32
    %c0_i32_0 = arith.constant 0 : i32
    return %arg0, %c0_i32 : i32, i32
  }
  func.func @transform_2(%arg0: i32) -> (i32, i32) {
    %c0_i32 = arith.constant 0 : i32
    %c0_i32_0 = arith.constant 0 : i32
    %c0_i32_1 = arith.constant 0 : i32
    return %c0_i32, %c0_i32_0 : i32, i32
  }
  func.func @transform_3(%arg0: i32) -> (i32, i32) {
    %c0_i32 = arith.constant 0 : i32
    %c0_i32_0 = arith.constant 0 : i32
    %c0_i32_1 = arith.constant 0 : i32
    return %c0_i32, %c0_i32_0 : i32, i32
  }
  func.func @transform_4(%arg0: i32) -> (i32, i32) {
    %c0_i32 = arith.constant 0 : i32
    %c0_i32_0 = arith.constant 0 : i32
    %c0_i32_1 = arith.constant 0 : i32
    return %c0_i32, %c0_i32_0 : i32, i32
  }
  func.func @transform_5(%arg0: i32) -> (i32, i32) {
    %c0_i32 = arith.constant 0 : i32
    %c0_i32_0 = arith.constant 0 : i32
    %c0_i32_1 = arith.constant 0 : i32
    return %c0_i32, %c0_i32_0 : i32, i32
  }
  func.func @transform_6(%arg0: i32) -> (i32, i32) {
    %c0_i32 = arith.constant 0 : i32
    %c0_i32_0 = arith.constant 0 : i32
    %c0_i32_1 = arith.constant 0 : i32
    return %c0_i32, %c0_i32_0 : i32, i32
  }
  func.func @transform_7(%arg0: i32) -> (i32, i32) {
    %c0_i32 = arith.constant 0 : i32
    %c0_i32_0 = arith.constant 0 : i32
    %c0_i32_1 = arith.constant 0 : i32
    return %c0_i32, %c0_i32_0 : i32, i32
  }
  func.func @transform_8(%arg0: i32) -> (i32, i32) {
    %c0_i32 = arith.constant 0 : i32
    %c0_i32_0 = arith.constant 0 : i32
    %c0_i32_1 = arith.constant 0 : i32
    return %c0_i32, %c0_i32_0 : i32, i32
  }
  func.func @transform_9(%arg0: i32) -> (i32, i32) {
    %c0_i32 = arith.constant 0 : i32
    %c0_i32_0 = arith.constant 0 : i32
    return %arg0, %c0_i32 : i32, i32
  }
}

</mosaic_0001>

<llo_original>
// kernel: discriminator_forward.1
$region0: #{discriminator_forward.1}
  #allocation0 [shape = 'u32[]', space=smem, size = 0x4, offset = 0x4, fixed_abs, tag = 'smem constant byte address 0x4 - core index']
  #allocation1 [shape = 'u32[72,128]{1,0:T(1,128)}', space=vmem, size = 0x9000, scoped, tag = 'internal scratch']
  #allocation2 [shape = 'f32[1,1]{1,0:T(1,128)S(1)}', space=vmem, size = 0x200, scoped, tag = 'scoped memory for discriminator_forward.1']
  %s0 = inlined_call_operand.vmem [shape: f32[8,784], index: 0, kind: input, shape index: {}]
  %s1 = inlined_call_operand.vmem [shape: f32[8,16], index: 1, kind: input, shape index: {}]
  %s2 = inlined_call_operand.hbm [shape: bf16[784,512], index: 2, kind: input, shape index: {}]
  %s3 = inlined_call_operand.vmem [shape: bf16[16,512], index: 3, kind: input, shape index: {}]
  %s4 = inlined_call_operand.vmem [shape: f32[1,512], index: 4, kind: input, shape index: {}]
  %s5 = inlined_call_operand.vmem [shape: bf16[512,256], index: 5, kind: input, shape index: {}]
  %s6 = inlined_call_operand.vmem [shape: f32[1,256], index: 6, kind: input, shape index: {}]
  %s7 = inlined_call_operand.vmem [shape: f32[1,256], index: 7, kind: input, shape index: {}]
  %s8 = inlined_call_operand.<no memory space> [shape: f32[1,1], index: 8, kind: input, shape index: {}]
  %s9 = inlined_call_operand.vmem [shape: bf16[8,128], index: 9, kind: output, shape index: {}]
  %s10 = sld [smem:[#allocation0]]
  $region50: #{discriminator_forward.1} parent=0
    _
  %s12 = ssub.s32 1, %s10
  %s13 = scalar_select 0, %s12, %s10
  %v14 = vstv %s8
  %15 = vst [vmem:[#allocation2] sm:$0x1] %v14
  $region1: #{discriminator_forward.1} parent=0
    #allocation3 [shape = 'u8[802816]{0}', space=vmem, size = 0xc4000, scoped, tag = 'input window, operand 2, single buffered']
    #allocation4 [shape = 's32[1]{0}', space=sflag, size = 0x4, scoped, tag = 'scoped memory for discriminator_forward.1']
    %16 = vsyncpa [#allocation4], 0
    // Predicated region
    $region2: #{discriminator_forward.1} parent=1 // pred_check
      _
    $region3: #{discriminator_forward.1} parent=1 // pred_check_branch
      %18 = sbr.rel (0) target = $region5
    $region4: #{discriminator_forward.1} parent=1 // pred_region
      _
    $region5: #{discriminator_forward.1} parent=1 // pred_fallthru
      _
    // Predicated region
    $region6: #{discriminator_forward.1} parent=1 // pred_check
      _
    $region7: #{discriminator_forward.1} parent=1 // pred_check_branch
      %20 = sbr.rel (0) target = $region9
    $region8: #{discriminator_forward.1} parent=1 // pred_region
      _
    $region9: #{discriminator_forward.1} parent=1 // pred_fallthru
      _
    // Predicated region
    $region10: #{discriminator_forward.1} parent=1 // pred_check
      _
    $region11: #{discriminator_forward.1} parent=1 // pred_check_branch
      %22 = sbr.rel (0) target = $region13
    $region12: #{discriminator_forward.1} parent=1 // pred_region
      %24 = vsyncadd [#allocation4], 0
      %s25 = sshll.u32 %s2, 4
      %s26 = int_to_ptr.hbm [resolvable:$true] %s25
      %s27 = sshll.u32 [#allocation3], 4
      %s28 = int_to_ptr.vmem [resolvable:$true] %s27
      %33 = dma.hbm_to_vmem [thread:$0]  %s26, 25088, %s28, [#allocation4], 256, 256, 16
    $region13: #{discriminator_forward.1} parent=1 // pred_fallthru
      _
    // Predicated region
    $region14: #{discriminator_forward.1} parent=1 // pred_check
      _
    $region15: #{discriminator_forward.1} parent=1 // pred_check_branch
      %35 = sbr.rel (0) target = $region17
    $region16: #{discriminator_forward.1} parent=1 // pred_region
      _
    $region17: #{discriminator_forward.1} parent=1 // pred_fallthru
      _
    // Predicated region
    $region18: #{discriminator_forward.1} parent=1 // pred_check
      _
    $region19: #{discriminator_forward.1} parent=1 // pred_check_branch
      %37 = sbr.rel (0) target = $region21
    $region20: #{discriminator_forward.1} parent=1 // pred_region
      _
    $region21: #{discriminator_forward.1} parent=1 // pred_fallthru
      _
    // Predicated region
    $region22: #{discriminator_forward.1} parent=1 // pred_check
      _
    $region23: #{discriminator_forward.1} parent=1 // pred_check_branch
      %39 = sbr.rel (0) target = $region25
    $region24: #{discriminator_forward.1} parent=1 // pred_region
      _
    $region25: #{discriminator_forward.1} parent=1 // pred_fallthru
      _
    // Predicated region
    $region26: #{discriminator_forward.1} parent=1 // pred_check
      _
    $region27: #{discriminator_forward.1} parent=1 // pred_check_branch
      %41 = sbr.rel (0) target = $region29
    $region28: #{discriminator_forward.1} parent=1 // pred_region
      _
    $region29: #{discriminator_forward.1} parent=1 // pred_fallthru
      _
    // Predicated region
    $region30: #{discriminator_forward.1} parent=1 // pred_check
      _
    $region31: #{discriminator_forward.1} parent=1 // pred_check_branch
      %43 = sbr.rel (0) target = $region33
    $region32: #{discriminator_forward.1} parent=1 // pred_region
      _
    $region33: #{discriminator_forward.1} parent=1 // pred_fallthru
      _
    // Predicated region
    $region34: #{discriminator_forward.1} parent=1 // pred_check
      _
    $region35: #{discriminator_forward.1} parent=1 // pred_check_branch
      %45 = sbr.rel (0) target = $region37
    $region36: #{discriminator_forward.1} parent=1 // pred_region
      _
    $region37: #{discriminator_forward.1} parent=1 // pred_fallthru
      _
    // Predicated region
    $region38: #{discriminator_forward.1} parent=1 // pred_check
      _
    $region39: #{discriminator_forward.1} parent=1 // pred_check_branch
      %47 = sbr.rel (0) target = $region41
    $region40: #{discriminator_forward.1} parent=1 // pred_region
      %49 = dma.done [#allocation4], 25088
    $region41: #{discriminator_forward.1} parent=1 // pred_fallthru
      _
    %v51 = vld [vmem:[%s0] sm:$0xff]
    %v52 = vld [vmem:[%s0 + $0x8] sm:$0xff]
    %v53 = vld [vmem:[%s0 + $0x10] sm:$0xff]
    %v54 = vld [vmem:[%s0 + $0x18] sm:$0xff]
    %v55 = vld [vmem:[%s0 + $0x20] sm:$0xff]
    %v56 = vld [vmem:[%s0 + $0x28] sm:$0xff]
    %v57 = vld [vmem:[%s0 + $0x30] sm:$0xff]
    %v58 = vpack.c.bf16 %v51, %v51
    %v59 = vpack.c.bf16 %v52, %v52
    %v60 = vpack.c.bf16 %v53, %v53
    %v61 = vpack.c.bf16 %v54, %v54
    %v62 = vpack.c.bf16 %v55, %v55
    %v63 = vpack.c.bf16 %v56, %v56
    %v64 = vpack.c.bf16 %v57, %v57
    %v65 = vld [vmem:[%s1] sm:$0xff]
    %v66 = vpack.c.bf16 %v65, %v65
    %v67 = vld [vmem:[#allocation3] sm:$0xff]
    %v68 = vld [vmem:[#allocation3 + $0x8] sm:$0xff]
    %v69 = vld [vmem:[#allocation3 + $0x10] sm:$0xff]
    %v70 = vld [vmem:[#allocation3 + $0x18] sm:$0xff]
    %v71 = vld [vmem:[#allocation3 + $0x20] sm:$0xff]
    %v72 = vld [vmem:[#allocation3 + $0x28] sm:$0xff]
    %v73 = vld [vmem:[#allocation3 + $0x30] sm:$0xff]
    %v74 = vld [vmem:[#allocation3 + $0x38] sm:$0xff]
    %v75 = vld [vmem:[#allocation3 + $0x40] sm:$0xff]
    %v76 = vld [vmem:[#allocation3 + $0x48] sm:$0xff]
    %v77 = vld [vmem:[#allocation3 + $0x50] sm:$0xff]
    %v78 = vld [vmem:[#allocation3 + $0x58] sm:$0xff]
    %v79 = vld [vmem:[#allocation3 + $0x60] sm:$0xff]
    %v80 = vld [vmem:[#allocation3 + $0x68] sm:$0xff]
    %v81 = vld [vmem:[#allocation3 + $0x70] sm:$0xff]
    %v82 = vld [vmem:[#allocation3 + $0x78] sm:$0xff]
    %v83 = vld [vmem:[#allocation3 + $0x80] sm:$0xff]
    %v84 = vld [vmem:[#allocation3 + $0x88] sm:$0xff]
    %v85 = vld [vmem:[#allocation3 + $0x90] sm:$0xff]
    %v86 = vld [vmem:[#allocation3 + $0x98] sm:$0xff]
    %v87 = vld [vmem:[#allocation3 + $0xa0] sm:$0xff]
    %v88 = vld [vmem:[#allocation3 + $0xa8] sm:$0xff]
    %v89 = vld [vmem:[#allocation3 + $0xb0] sm:$0xff]
    %v90 = vld [vmem:[#allocation3 + $0xb8] sm:$0xff]
    %v91 = vld [vmem:[#allocation3 + $0xc0] sm:$0xff]
    %v92 = vld [vmem:[#allocation3 + $0xc8] sm:$0xff]
    %v93 = vld [vmem:[#allocation3 + $0xd0] sm:$0xff]
    %v94 = vld [vmem:[#allocation3 + $0xd8] sm:$0xff]
    %v95 = vld [vmem:[#allocation3 + $0xe0] sm:$0xff]
    %v96 = vld [vmem:[#allocation3 + $0xe8] sm:$0xff]
    %v97 = vld [vmem:[#allocation3 + $0xf0] sm:$0xff]
    %v98 = vld [vmem:[#allocation3 + $0xf8] sm:$0xff]
    %v99 = vld [vmem:[#allocation3 + $0x100] sm:$0xff]
    %v100 = vld [vmem:[#allocation3 + $0x108] sm:$0xff]
    %v101 = vld [vmem:[#allocation3 + $0x110] sm:$0xff]
    %v102 = vld [vmem:[#allocation3 + $0x118] sm:$0xff]
    %v103 = vld [vmem:[#allocation3 + $0x120] sm:$0xff]
    %v104 = vld [vmem:[#allocation3 + $0x128] sm:$0xff]
    %v105 = vld [vmem:[#allocation3 + $0x130] sm:$0xff]
    %v106 = vld [vmem:[#allocation3 + $0x138] sm:$0xff]
    %v107 = vld [vmem:[#allocation3 + $0x140] sm:$0xff]
    %v108 = vld [vmem:[#allocation3 + $0x148] sm:$0xff]
    %v109 = vld [vmem:[#allocation3 + $0x150] sm:$0xff]
    %v110 = vld [vmem:[#allocation3 + $0x158] sm:$0xff]
    %v111 = vld [vmem:[#allocation3 + $0x160] sm:$0xff]
    %v112 = vld [vmem:[#allocation3 + $0x168] sm:$0xff]
    %v113 = vld [vmem:[#allocation3 + $0x170] sm:$0xff]
    %v114 = vld [vmem:[#allocation3 + $0x178] sm:$0xff]
    %v115 = vld [vmem:[#allocation3 + $0x180] sm:$0xff]
    %v116 = vld [vmem:[#allocation3 + $0x188] sm:$0xff]
    %v117 = vld [vmem:[#allocation3 + $0x190] sm:$0xff]
    %v118 = vld [vmem:[#allocation3 + $0x198] sm:$0xff]
    %v119 = vld [vmem:[#allocation3 + $0x1a0] sm:$0xff]
    %v120 = vld [vmem:[#allocation3 + $0x1a8] sm:$0xff]
    %v121 = vld [vmem:[#allocation3 + $0x1b0] sm:$0xff]
    %v122 = vld [vmem:[#allocation3 + $0x1b8] sm:$0xff]
    %v123 = vld [vmem:[#allocation3 + $0x1c0] sm:$0xff]
    %v124 = vld [vmem:[#allocation3 + $0x1c8] sm:$0xff]
    %v125 = vld [vmem:[#allocation3 + $0x1d0] sm:$0xff]
    %v126 = vld [vmem:[#allocation3 + $0x1d8] sm:$0xff]
    %v127 = vld [vmem:[#allocation3 + $0x1e0] sm:$0xff]
    %v128 = vld [vmem:[#allocation3 + $0x1e8] sm:$0xff]
    %v129 = vld [vmem:[#allocation3 + $0x1f0] sm:$0xff]
    %v130 = vld [vmem:[#allocation3 + $0x1f8] sm:$0xff]
    %v131 = vld [vmem:[#allocation3 + $0x200] sm:$0xff]
    %v132 = vld [vmem:[#allocation3 + $0x208] sm:$0xff]
    %v133 = vld [vmem:[#allocation3 + $0x210] sm:$0xff]
    %v134 = vld [vmem:[#allocation3 + $0x218] sm:$0xff]
    %v135 = vld [vmem:[#allocation3 + $0x220] sm:$0xff]
    %v136 = vld [vmem:[#allocation3 + $0x228] sm:$0xff]
    %v137 = vld [vmem:[#allocation3 + $0x230] sm:$0xff]
    %v138 = vld [vmem:[#allocation3 + $0x238] sm:$0xff]
    %v139 = vld [vmem:[#allocation3 + $0x240] sm:$0xff]
    %v140 = vld [vmem:[#allocation3 + $0x248] sm:$0xff]
    %v141 = vld [vmem:[#allocation3 + $0x250] sm:$0xff]
    %v142 = vld [vmem:[#allocation3 + $0x258] sm:$0xff]
    %v143 = vld [vmem:[#allocation3 + $0x260] sm:$0xff]
    %v144 = vld [vmem:[#allocation3 + $0x268] sm:$0xff]
    %v145 = vld [vmem:[#allocation3 + $0x270] sm:$0xff]
    %v146 = vld [vmem:[#allocation3 + $0x278] sm:$0xff]
    %v147 = vld [vmem:[#allocation3 + $0x280] sm:$0xff]
    %v148 = vld [vmem:[#allocation3 + $0x288] sm:$0xff]
    %v149 = vld [vmem:[#allocation3 + $0x290] sm:$0xff]
    %v150 = vld [vmem:[#allocation3 + $0x298] sm:$0xff]
    %v151 = vld [vmem:[#allocation3 + $0x2a0] sm:$0xff]
    %v152 = vld [vmem:[#allocation3 + $0x2a8] sm:$0xff]
    %v153 = vld [vmem:[#allocation3 + $0x2b0] sm:$0xff]
    %v154 = vld [vmem:[#allocation3 + $0x2b8] sm:$0xff]
    %v155 = vld [vmem:[#allocation3 + $0x2c0] sm:$0xff]
    %v156 = vld [vmem:[#allocation3 + $0x2c8] sm:$0xff]
    %v157 = vld [vmem:[#allocation3 + $0x2d0] sm:$0xff]
    %v158 = vld [vmem:[#allocation3 + $0x2d8] sm:$0xff]
    %v159 = vld [vmem:[#allocation3 + $0x2e0] sm:$0xff]
    %v160 = vld [vmem:[#allocation3 + $0x2e8] sm:$0xff]
    %v161 = vld [vmem:[#allocation3 + $0x2f0] sm:$0xff]
    %v162 = vld [vmem:[#allocation3 + $0x2f8] sm:$0xff]
    %v163 = vld [vmem:[#allocation3 + $0x300] sm:$0xff]
    %v164 = vld [vmem:[#allocation3 + $0x308] sm:$0xff]
    %v165 = vld [vmem:[#allocation3 + $0x310] sm:$0xff]
    %v166 = vld [vmem:[#allocation3 + $0x318] sm:$0xff]
    %v167 = vld [vmem:[#allocation3 + $0x320] sm:$0xff]
    %v168 = vld [vmem:[#allocation3 + $0x328] sm:$0xff]
    %v169 = vld [vmem:[#allocation3 + $0x330] sm:$0xff]
    %v170 = vld [vmem:[#allocation3 + $0x338] sm:$0xff]
    %v171 = vld [vmem:[#allocation3 + $0x340] sm:$0xff]
    %v172 = vld [vmem:[#allocation3 + $0x348] sm:$0xff]
    %v173 = vld [vmem:[#allocation3 + $0x350] sm:$0xff]
    %v174 = vld [vmem:[#allocation3 + $0x358] sm:$0xff]
    %v175 = vld [vmem:[#allocation3 + $0x360] sm:$0xff]
    %v176 = vld [vmem:[#allocation3 + $0x368] sm:$0xff]
    %v177 = vld [vmem:[#allocation3 + $0x370] sm:$0xff]
    %v178 = vld [vmem:[#allocation3 + $0x378] sm:$0xff]
    %v179 = vld [vmem:[#allocation3 + $0x380] sm:$0xff]
    %v180 = vld [vmem:[#allocation3 + $0x388] sm:$0xff]
    %v181 = vld [vmem:[#allocation3 + $0x390] sm:$0xff]
    %v182 = vld [vmem:[#allocation3 + $0x398] sm:$0xff]
    %v183 = vld [vmem:[#allocation3 + $0x3a0] sm:$0xff]
    %v184 = vld [vmem:[#allocation3 + $0x3a8] sm:$0xff]
    %v185 = vld [vmem:[#allocation3 + $0x3b0] sm:$0xff]
    %v186 = vld [vmem:[#allocation3 + $0x3b8] sm:$0xff]
    %v187 = vld [vmem:[#allocation3 + $0x3c0] sm:$0xff]
    %v188 = vld [vmem:[#allocation3 + $0x3c8] sm:$0xff]
    %v189 = vld [vmem:[#allocation3 + $0x3d0] sm:$0xff]
    %v190 = vld [vmem:[#allocation3 + $0x3d8] sm:$0xff]
    %v191 = vld [vmem:[#allocation3 + $0x3e0] sm:$0xff]
    %v192 = vld [vmem:[#allocation3 + $0x3e8] sm:$0xff]
    %v193 = vld [vmem:[#allocation3 + $0x3f0] sm:$0xff]
    %v194 = vld [vmem:[#allocation3 + $0x3f8] sm:$0xff]
    %v195 = vld [vmem:[#allocation3 + $0x400] sm:$0xff]
    %v196 = vld [vmem:[#allocation3 + $0x408] sm:$0xff]
    %v197 = vld [vmem:[#allocation3 + $0x410] sm:$0xff]
    %v198 = vld [vmem:[#allocation3 + $0x418] sm:$0xff]
    %v199 = vld [vmem:[#allocation3 + $0x420] sm:$0xff]
    %v200 = vld [vmem:[#allocation3 + $0x428] sm:$0xff]
    %v201 = vld [vmem:[#allocation3 + $0x430] sm:$0xff]
    %v202 = vld [vmem:[#allocation3 + $0x438] sm:$0xff]
    %v203 = vld [vmem:[#allocation3 + $0x440] sm:$0xff]
    %v204 = vld [vmem:[#allocation3 + $0x448] sm:$0xff]
    %v205 = vld [vmem:[#allocation3 + $0x450] sm:$0xff]
    %v206 = vld [vmem:[#allocation3 + $0x458] sm:$0xff]
    %v207 = vld [vmem:[#allocation3 + $0x460] sm:$0xff]
    %v208 = vld [vmem:[#allocation3 + $0x468] sm:$0xff]
    %v209 = vld [vmem:[#allocation3 + $0x470] sm:$0xff]
    %v210 = vld [vmem:[#allocation3 + $0x478] sm:$0xff]
    %v211 = vld [vmem:[#allocation3 + $0x480] sm:$0xff]
    %v212 = vld [vmem:[#allocation3 + $0x488] sm:$0xff]
    %v213 = vld [vmem:[#allocation3 + $0x490] sm:$0xff]
    %v214 = vld [vmem:[#allocation3 + $0x498] sm:$0xff]
    %v215 = vld [vmem:[#allocation3 + $0x4a0] sm:$0xff]
    %v216 = vld [vmem:[#allocation3 + $0x4a8] sm:$0xff]
    %v217 = vld [vmem:[#allocation3 + $0x4b0] sm:$0xff]
    %v218 = vld [vmem:[#allocation3 + $0x4b8] sm:$0xff]
    %v219 = vld [vmem:[#allocation3 + $0x4c0] sm:$0xff]
    %v220 = vld [vmem:[#allocation3 + $0x4c8] sm:$0xff]
    %v221 = vld [vmem:[#allocation3 + $0x4d0] sm:$0xff]
    %v222 = vld [vmem:[#allocation3 + $0x4d8] sm:$0xff]
    %v223 = vld [vmem:[#allocation3 + $0x4e0] sm:$0xff]
    %v224 = vld [vmem:[#allocation3 + $0x4e8] sm:$0xff]
    %v225 = vld [vmem:[#allocation3 + $0x4f0] sm:$0xff]
    %v226 = vld [vmem:[#allocation3 + $0x4f8] sm:$0xff]
    %v227 = vld [vmem:[#allocation3 + $0x500] sm:$0xff]
    %v228 = vld [vmem:[#allocation3 + $0x508] sm:$0xff]
    %v229 = vld [vmem:[#allocation3 + $0x510] sm:$0xff]
    %v230 = vld [vmem:[#allocation3 + $0x518] sm:$0xff]
    %v231 = vld [vmem:[#allocation3 + $0x520] sm:$0xff]
    %v232 = vld [vmem:[#allocation3 + $0x528] sm:$0xff]
    %v233 = vld [vmem:[#allocation3 + $0x530] sm:$0xff]
    %v234 = vld [vmem:[#allocation3 + $0x538] sm:$0xff]
    %v235 = vld [vmem:[#allocation3 + $0x540] sm:$0xff]
    %v236 = vld [vmem:[#allocation3 + $0x548] sm:$0xff]
    %v237 = vld [vmem:[#allocation3 + $0x550] sm:$0xff]
    %v238 = vld [vmem:[#allocation3 + $0x558] sm:$0xff]
    %v239 = vld [vmem:[#allocation3 + $0x560] sm:$0xff]
    %v240 = vld [vmem:[#allocation3 + $0x568] sm:$0xff]
    %v241 = vld [vmem:[#allocation3 + $0x570] sm:$0xff]
    %v242 = vld [vmem:[#allocation3 + $0x578] sm:$0xff]
    %v243 = vld [vmem:[#allocation3 + $0x580] sm:$0xff]
    %v244 = vld [vmem:[#allocation3 + $0x588] sm:$0xff]
    %v245 = vld [vmem:[#allocation3 + $0x590] sm:$0xff]
    %v246 = vld [vmem:[#allocation3 + $0x598] sm:$0xff]
    %v247 = vld [vmem:[#allocation3 + $0x5a0] sm:$0xff]
    %v248 = vld [vmem:[#allocation3 + $0x5a8] sm:$0xff]
    %v249 = vld [vmem:[#allocation3 + $0x5b0] sm:$0xff]
    %v250 = vld [vmem:[#allocation3 + $0x5b8] sm:$0xff]
    %v251 = vld [vmem:[#allocation3 + $0x5c0] sm:$0xff]
    %v252 = vld [vmem:[#allocation3 + $0x5c8] sm:$0xff]
    %v253 = vld [vmem:[#allocation3 + $0x5d0] sm:$0xff]
    %v254 = vld [vmem:[#allocation3 + $0x5d8] sm:$0xff]
    %v255 = vld [vmem:[#allocation3 + $0x5e0] sm:$0xff]
    %v256 = vld [vmem:[#allocation3 + $0x5e8] sm:$0xff]
    %v257 = vld [vmem:[#allocation3 + $0x5f0] sm:$0xff]
    %v258 = vld [vmem:[#allocation3 + $0x5f8] sm:$0xff]
    %v259 = vld [vmem:[#allocation3 + $0x600] sm:$0xff]
    %v260 = vld [vmem:[#allocation3 + $0x608] sm:$0xff]
    %v261 = vld [vmem:[#allocation3 + $0x610] sm:$0xff]
    %v262 = vld [vmem:[#allocation3 + $0x618] sm:$0xff]
    %v263 = vld [vmem:[%s3] sm:$0xff]
    %v264 = vld [vmem:[%s3 + $0x8] sm:$0xff]
    %v265 = vld [vmem:[%s3 + $0x10] sm:$0xff]
    %v266 = vld [vmem:[%s3 + $0x18] sm:$0xff]
    %v271 = vunpack.c.l.b16 %v263
    %v272 = vunpack.c.h.b16 %v263
    %v273 = vunpack.c.l.b16 %v264
    %v274 = vunpack.c.h.b16 %v264
    %v275 = vunpack.c.l.b16 %v265
    %v276 = vunpack.c.h.b16 %v265
    %v277 = vunpack.c.l.b16 %v266
    %v278 = vunpack.c.h.b16 %v266
    %v279 = vpack.c.b16 %v275, %v271
    %v280 = vpack.c.b16 %v276, %v272
    %v281 = vpack.c.b16 %v277, %v273
    %v282 = vpack.c.b16 %v278, %v274
    %vm287 = vcmask 130048
    %v289 = vsel %vm287, %v66, 0
    %291 = vmatpush.bf16.msra.mxu0 0
    %292 = vmatpush.bf16.msra.mxu0 0
    %293 = vmatpush.bf16.msra.mxu0 0
    %294 = vmatpush.bf16.msra.mxu0 0
    %295 = vmatpush.bf16.msra.mxu0 0
    %296 = vmatpush.bf16.msra.mxu0 0
    %297 = vmatpush.bf16.msra.mxu0 0
    %298 = vmatpush.bf16.msra.mxu0 %v279
    %299 = vmatmul.bf16.gmra.mxu0 %v289
    %v300 = vpop.f32.mrf.mxu0
    %v301 = vadd.f32 0.0, %v300
    %v302 = vpop.f32.mrf.mxu0
    %303 = vdwg.mxu0
    %304 = vmatpush.bf16.msra.mxu0 0
    %305 = vmatpush.bf16.msra.mxu0 0
    %306 = vmatpush.bf16.msra.mxu0 0
    %307 = vmatpush.bf16.msra.mxu0 0
    %308 = vmatpush.bf16.msra.mxu0 0
    %309 = vmatpush.bf16.msra.mxu0 0
    %310 = vmatpush.bf16.msra.mxu0 0
    %311 = vmatpush.bf16.msra.mxu0 %v280
    %312 = vmatmul.bf16.gmra.mxu0 %v289
    %v313 = vpop.f32.mrf.mxu0
    %v314 = vadd.f32 0.0, %v313
    %v315 = vpop.f32.mrf.mxu0
    %316 = vdwg.mxu0
    %317 = vmatpush.bf16.msra.mxu0 0
    %318 = vmatpush.bf16.msra.mxu0 0
    %319 = vmatpush.bf16.msra.mxu0 0
    %320 = vmatpush.bf16.msra.mxu0 0
    %321 = vmatpush.bf16.msra.mxu0 0
    %322 = vmatpush.bf16.msra.mxu0 0
    %323 = vmatpush.bf16.msra.mxu0 0
    %324 = vmatpush.bf16.msra.mxu0 %v281
    %325 = vmatmul.bf16.gmra.mxu0 %v289
    %v326 = vpop.f32.mrf.mxu0
    %v327 = vadd.f32 0.0, %v326
    %v328 = vpop.f32.mrf.mxu0
    %329 = vdwg.mxu0
    %330 = vmatpush.bf16.msra.mxu0 0
    %331 = vmatpush.bf16.msra.mxu0 0
    %332 = vmatpush.bf16.msra.mxu0 0
    %333 = vmatpush.bf16.msra.mxu0 0
    %334 = vmatpush.bf16.msra.mxu0 0
    %335 = vmatpush.bf16.msra.mxu0 0
    %336 = vmatpush.bf16.msra.mxu0 0
    %337 = vmatpush.bf16.msra.mxu0 %v282
    %338 = vmatmul.bf16.gmra.mxu0 %v289
    %v339 = vpop.f32.mrf.mxu0
    %v340 = vadd.f32 0.0, %v339
    %v341 = vpop.f32.mrf.mxu0
    %342 = vdwg.mxu0
    %v539 = vunpack.c.l.b16 %v67
    %v540 = vunpack.c.h.b16 %v67
    %v541 = vunpack.c.l.b16 %v68
    %v542 = vunpack.c.h.b16 %v68
    %v543 = vunpack.c.l.b16 %v69
    %v544 = vunpack.c.h.b16 %v69
    %v545 = vunpack.c.l.b16 %v70
    %v546 = vunpack.c.h.b16 %v70
    %v547 = vunpack.c.l.b16 %v71
    %v548 = vunpack.c.h.b16 %v71
    %v549 = vunpack.c.l.b16 %v72
    %v550 = vunpack.c.h.b16 %v72
    %v551 = vunpack.c.l.b16 %v73
    %v552 = vunpack.c.h.b16 %v73
    %v553 = vunpack.c.l.b16 %v74
    %v554 = vunpack.c.h.b16 %v74
    %v555 = vunpack.c.l.b16 %v75
    %v556 = vunpack.c.h.b16 %v75
    %v557 = vunpack.c.l.b16 %v76
    %v558 = vunpack.c.h.b16 %v76
    %v559 = vunpack.c.l.b16 %v77
    %v560 = vunpack.c.h.b16 %v77
    %v561 = vunpack.c.l.b16 %v78
    %v562 = vunpack.c.h.b16 %v78
    %v563 = vunpack.c.l.b16 %v79
    %v564 = vunpack.c.h.b16 %v79
    %v565 = vunpack.c.l.b16 %v80
    %v566 = vunpack.c.h.b16 %v80
    %v567 = vunpack.c.l.b16 %v81
    %v568 = vunpack.c.h.b16 %v81
    %v569 = vunpack.c.l.b16 %v82
    %v570 = vunpack.c.h.b16 %v82
    %v571 = vunpack.c.l.b16 %v83
    %v572 = vunpack.c.h.b16 %v83
    %v573 = vunpack.c.l.b16 %v84
    %v574 = vunpack.c.h.b16 %v84
    %v575 = vunpack.c.l.b16 %v85
    %v576 = vunpack.c.h.b16 %v85
    %v577 = vunpack.c.l.b16 %v86
    %v578 = vunpack.c.h.b16 %v86
    %v579 = vunpack.c.l.b16 %v87
    %v580 = vunpack.c.h.b16 %v87
    %v581 = vunpack.c.l.b16 %v88
    %v582 = vunpack.c.h.b16 %v88
    %v583 = vunpack.c.l.b16 %v89
    %v584 = vunpack.c.h.b16 %v89
    %v585 = vunpack.c.l.b16 %v90
    %v586 = vunpack.c.h.b16 %v90
    %v587 = vunpack.c.l.b16 %v91
    %v588 = vunpack.c.h.b16 %v91
    %v589 = vunpack.c.l.b16 %v92
    %v590 = vunpack.c.h.b16 %v92
    %v591 = vunpack.c.l.b16 %v93
    %v592 = vunpack.c.h.b16 %v93
    %v593 = vunpack.c.l.b16 %v94
    %v594 = vunpack.c.h.b16 %v94
    %v595 = vunpack.c.l.b16 %v95
    %v596 = vunpack.c.h.b16 %v95
    %v597 = vunpack.c.l.b16 %v96
    %v598 = vunpack.c.h.b16 %v96
    %v599 = vunpack.c.l.b16 %v97
    %v600 = vunpack.c.h.b16 %v97
    %v601 = vunpack.c.l.b16 %v98
    %v602 = vunpack.c.h.b16 %v98
    %v603 = vunpack.c.l.b16 %v99
    %v604 = vunpack.c.h.b16 %v99
    %v605 = vunpack.c.l.b16 %v100
    %v606 = vunpack.c.h.b16 %v100
    %v607 = vunpack.c.l.b16 %v101
    %v608 = vunpack.c.h.b16 %v101
    %v609 = vunpack.c.l.b16 %v102
    %v610 = vunpack.c.h.b16 %v102
    %v611 = vunpack.c.l.b16 %v103
    %v612 = vunpack.c.h.b16 %v103
    %v613 = vunpack.c.l.b16 %v104
    %v614 = vunpack.c.h.b16 %v104
    %v615 = vunpack.c.l.b16 %v105
    %v616 = vunpack.c.h.b16 %v105
    %v617 = vunpack.c.l.b16 %v106
    %v618 = vunpack.c.h.b16 %v106
    %v619 = vunpack.c.l.b16 %v107
    %v620 = vunpack.c.h.b16 %v107
    %v621 = vunpack.c.l.b16 %v108
    %v622 = vunpack.c.h.b16 %v108
    %v623 = vunpack.c.l.b16 %v109
    %v624 = vunpack.c.h.b16 %v109
    %v625 = vunpack.c.l.b16 %v110
    %v626 = vunpack.c.h.b16 %v110
    %v627 = vunpack.c.l.b16 %v111
    %v628 = vunpack.c.h.b16 %v111
    %v629 = vunpack.c.l.b16 %v112
    %v630 = vunpack.c.h.b16 %v112
    %v631 = vunpack.c.l.b16 %v113
    %v632 = vunpack.c.h.b16 %v113
    %v633 = vunpack.c.l.b16 %v114
    %v634 = vunpack.c.h.b16 %v114
    %v635 = vunpack.c.l.b16 %v115
    %v636 = vunpack.c.h.b16 %v115
    %v637 = vunpack.c.l.b16 %v116
    %v638 = vunpack.c.h.b16 %v116
    %v639 = vunpack.c.l.b16 %v117
    %v640 = vunpack.c.h.b16 %v117
    %v641 = vunpack.c.l.b16 %v118
    %v642 = vunpack.c.h.b16 %v118
    %v643 = vunpack.c.l.b16 %v119
    %v644 = vunpack.c.h.b16 %v119
    %v645 = vunpack.c.l.b16 %v120
    %v646 = vunpack.c.h.b16 %v120
    %v647 = vunpack.c.l.b16 %v121
    %v648 = vunpack.c.h.b16 %v121
    %v649 = vunpack.c.l.b16 %v122
    %v650 = vunpack.c.h.b16 %v122
    %v651 = vunpack.c.l.b16 %v123
    %v652 = vunpack.c.h.b16 %v123
    %v653 = vunpack.c.l.b16 %v124
    %v654 = vunpack.c.h.b16 %v124
    %v655 = vunpack.c.l.b16 %v125
    %v656 = vunpack.c.h.b16 %v125
    %v657 = vunpack.c.l.b16 %v126
    %v658 = vunpack.c.h.b16 %v126
    %v659 = vunpack.c.l.b16 %v127
    %v660 = vunpack.c.h.b16 %v127
    %v661 = vunpack.c.l.b16 %v128
    %v662 = vunpack.c.h.b16 %v128
    %v663 = vunpack.c.l.b16 %v129
    %v664 = vunpack.c.h.b16 %v129
    %v665 = vunpack.c.l.b16 %v130
    %v666 = vunpack.c.h.b16 %v130
    %v667 = vunpack.c.l.b16 %v131
    %v668 = vunpack.c.h.b16 %v131
    %v669 = vunpack.c.l.b16 %v132
    %v670 = vunpack.c.h.b16 %v132
    %v671 = vunpack.c.l.b16 %v133
    %v672 = vunpack.c.h.b16 %v133
    %v673 = vunpack.c.l.b16 %v134
    %v674 = vunpack.c.h.b16 %v134
    %v675 = vunpack.c.l.b16 %v135
    %v676 = vunpack.c.h.b16 %v135
    %v677 = vunpack.c.l.b16 %v136
    %v678 = vunpack.c.h.b16 %v136
    %v679 = vunpack.c.l.b16 %v137
    %v680 = vunpack.c.h.b16 %v137
    %v681 = vunpack.c.l.b16 %v138
    %v682 = vunpack.c.h.b16 %v138
    %v683 = vunpack.c.l.b16 %v139
    %v684 = vunpack.c.h.b16 %v139
    %v685 = vunpack.c.l.b16 %v140
    %v686 = vunpack.c.h.b16 %v140
    %v687 = vunpack.c.l.b16 %v141
    %v688 = vunpack.c.h.b16 %v141
    %v689 = vunpack.c.l.b16 %v142
    %v690 = vunpack.c.h.b16 %v142
    %v691 = vunpack.c.l.b16 %v143
    %v692 = vunpack.c.h.b16 %v143
    %v693 = vunpack.c.l.b16 %v144
    %v694 = vunpack.c.h.b16 %v144
    %v695 = vunpack.c.l.b16 %v145
    %v696 = vunpack.c.h.b16 %v145
    %v697 = vunpack.c.l.b16 %v146
    %v698 = vunpack.c.h.b16 %v146
    %v699 = vunpack.c.l.b16 %v147
    %v700 = vunpack.c.h.b16 %v147
    %v701 = vunpack.c.l.b16 %v148
    %v702 = vunpack.c.h.b16 %v148
    %v703 = vunpack.c.l.b16 %v149
    %v704 = vunpack.c.h.b16 %v149
    %v705 = vunpack.c.l.b16 %v150
    %v706 = vunpack.c.h.b16 %v150
    %v707 = vunpack.c.l.b16 %v151
    %v708 = vunpack.c.h.b16 %v151
    %v709 = vunpack.c.l.b16 %v152
    %v710 = vunpack.c.h.b16 %v152
    %v711 = vunpack.c.l.b16 %v153
    %v712 = vunpack.c.h.b16 %v153
    %v713 = vunpack.c.l.b16 %v154
    %v714 = vunpack.c.h.b16 %v154
    %v715 = vunpack.c.l.b16 %v155
    %v716 = vunpack.c.h.b16 %v155
    %v717 = vunpack.c.l.b16 %v156
    %v718 = vunpack.c.h.b16 %v156
    %v719 = vunpack.c.l.b16 %v157
    %v720 = vunpack.c.h.b16 %v157
    %v721 = vunpack.c.l.b16 %v158
    %v722 = vunpack.c.h.b16 %v158
    %v723 = vunpack.c.l.b16 %v159
    %v724 = vunpack.c.h.b16 %v159
    %v725 = vunpack.c.l.b16 %v160
    %v726 = vunpack.c.h.b16 %v160
    %v727 = vunpack.c.l.b16 %v161
    %v728 = vunpack.c.h.b16 %v161
    %v729 = vunpack.c.l.b16 %v162
    %v730 = vunpack.c.h.b16 %v162
    %v731 = vunpack.c.l.b16 %v163
    %v732 = vunpack.c.h.b16 %v163
    %v733 = vunpack.c.l.b16 %v164
    %v734 = vunpack.c.h.b16 %v164
    %v735 = vunpack.c.l.b16 %v165
    %v736 = vunpack.c.h.b16 %v165
    %v737 = vunpack.c.l.b16 %v166
    %v738 = vunpack.c.h.b16 %v166
    %v739 = vunpack.c.l.b16 %v167
    %v740 = vunpack.c.h.b16 %v167
    %v741 = vunpack.c.l.b16 %v168
    %v742 = vunpack.c.h.b16 %v168
    %v743 = vunpack.c.l.b16 %v169
    %v744 = vunpack.c.h.b16 %v169
    %v745 = vunpack.c.l.b16 %v170
    %v746 = vunpack.c.h.b16 %v170
    %v747 = vunpack.c.l.b16 %v171
    %v748 = vunpack.c.h.b16 %v171
    %v749 = vunpack.c.l.b16 %v172
    %v750 = vunpack.c.h.b16 %v172
    %v751 = vunpack.c.l.b16 %v173
    %v752 = vunpack.c.h.b16 %v173
    %v753 = vunpack.c.l.b16 %v174
    %v754 = vunpack.c.h.b16 %v174
    %v755 = vunpack.c.l.b16 %v175
    %v756 = vunpack.c.h.b16 %v175
    %v757 = vunpack.c.l.b16 %v176
    %v758 = vunpack.c.h.b16 %v176
    %v759 = vunpack.c.l.b16 %v177
    %v760 = vunpack.c.h.b16 %v177
    %v761 = vunpack.c.l.b16 %v178
    %v762 = vunpack.c.h.b16 %v178
    %v763 = vunpack.c.l.b16 %v179
    %v764 = vunpack.c.h.b16 %v179
    %v765 = vunpack.c.l.b16 %v180
    %v766 = vunpack.c.h.b16 %v180
    %v767 = vunpack.c.l.b16 %v181
    %v768 = vunpack.c.h.b16 %v181
    %v769 = vunpack.c.l.b16 %v182
    %v770 = vunpack.c.h.b16 %v182
    %v771 = vunpack.c.l.b16 %v183
    %v772 = vunpack.c.h.b16 %v183
    %v773 = vunpack.c.l.b16 %v184
    %v774 = vunpack.c.h.b16 %v184
    %v775 = vunpack.c.l.b16 %v185
    %v776 = vunpack.c.h.b16 %v185
    %v777 = vunpack.c.l.b16 %v186
    %v778 = vunpack.c.h.b16 %v186
    %v779 = vunpack.c.l.b16 %v187
    %v780 = vunpack.c.h.b16 %v187
    %v781 = vunpack.c.l.b16 %v188
    %v782 = vunpack.c.h.b16 %v188
    %v783 = vunpack.c.l.b16 %v189
    %v784 = vunpack.c.h.b16 %v189
    %v785 = vunpack.c.l.b16 %v190
    %v786 = vunpack.c.h.b16 %v190
    %v787 = vunpack.c.l.b16 %v191
    %v788 = vunpack.c.h.b16 %v191
    %v789 = vunpack.c.l.b16 %v192
    %v790 = vunpack.c.h.b16 %v192
    %v791 = vunpack.c.l.b16 %v193
    %v792 = vunpack.c.h.b16 %v193
    %v793 = vunpack.c.l.b16 %v194
    %v794 = vunpack.c.h.b16 %v194
    %v795 = vunpack.c.l.b16 %v195
    %v796 = vunpack.c.h.b16 %v195
    %v797 = vunpack.c.l.b16 %v196
    %v798 = vunpack.c.h.b16 %v196
    %v799 = vunpack.c.l.b16 %v197
    %v800 = vunpack.c.h.b16 %v197
    %v801 = vunpack.c.l.b16 %v198
    %v802 = vunpack.c.h.b16 %v198
    %v803 = vunpack.c.l.b16 %v199
    %v804 = vunpack.c.h.b16 %v199
    %v805 = vunpack.c.l.b16 %v200
    %v806 = vunpack.c.h.b16 %v200
    %v807 = vunpack.c.l.b16 %v201
    %v808 = vunpack.c.h.b16 %v201
    %v809 = vunpack.c.l.b16 %v202
    %v810 = vunpack.c.h.b16 %v202
    %v811 = vunpack.c.l.b16 %v203
    %v812 = vunpack.c.h.b16 %v203
    %v813 = vunpack.c.l.b16 %v204
    %v814 = vunpack.c.h.b16 %v204
    %v815 = vunpack.c.l.b16 %v205
    %v816 = vunpack.c.h.b16 %v205
    %v817 = vunpack.c.l.b16 %v206
    %v818 = vunpack.c.h.b16 %v206
    %v819 = vunpack.c.l.b16 %v207
    %v820 = vunpack.c.h.b16 %v207
    %v821 = vunpack.c.l.b16 %v208
    %v822 = vunpack.c.h.b16 %v208
    %v823 = vunpack.c.l.b16 %v209
    %v824 = vunpack.c.h.b16 %v209
    %v825 = vunpack.c.l.b16 %v210
    %v826 = vunpack.c.h.b16 %v210
    %v827 = vunpack.c.l.b16 %v211
    %v828 = vunpack.c.h.b16 %v211
    %v829 = vunpack.c.l.b16 %v212
    %v830 = vunpack.c.h.b16 %v212
    %v831 = vunpack.c.l.b16 %v213
    %v832 = vunpack.c.h.b16 %v213
    %v833 = vunpack.c.l.b16 %v214
    %v834 = vunpack.c.h.b16 %v214
    %v835 = vunpack.c.l.b16 %v215
    %v836 = vunpack.c.h.b16 %v215
    %v837 = vunpack.c.l.b16 %v216
    %v838 = vunpack.c.h.b16 %v216
    %v839 = vunpack.c.l.b16 %v217
    %v840 = vunpack.c.h.b16 %v217
    %v841 = vunpack.c.l.b16 %v218
    %v842 = vunpack.c.h.b16 %v218
    %v843 = vunpack.c.l.b16 %v219
    %v844 = vunpack.c.h.b16 %v219
    %v845 = vunpack.c.l.b16 %v220
    %v846 = vunpack.c.h.b16 %v220
    %v847 = vunpack.c.l.b16 %v221
    %v848 = vunpack.c.h.b16 %v221
    %v849 = vunpack.c.l.b16 %v222
    %v850 = vunpack.c.h.b16 %v222
    %v851 = vunpack.c.l.b16 %v223
    %v852 = vunpack.c.h.b16 %v223
    %v853 = vunpack.c.l.b16 %v224
    %v854 = vunpack.c.h.b16 %v224
    %v855 = vunpack.c.l.b16 %v225
    %v856 = vunpack.c.h.b16 %v225
    %v857 = vunpack.c.l.b16 %v226
    %v858 = vunpack.c.h.b16 %v226
    %v859 = vunpack.c.l.b16 %v227
    %v860 = vunpack.c.h.b16 %v227
    %v861 = vunpack.c.l.b16 %v228
    %v862 = vunpack.c.h.b16 %v228
    %v863 = vunpack.c.l.b16 %v229
    %v864 = vunpack.c.h.b16 %v229
    %v865 = vunpack.c.l.b16 %v230
    %v866 = vunpack.c.h.b16 %v230
    %v867 = vunpack.c.l.b16 %v231
    %v868 = vunpack.c.h.b16 %v231
    %v869 = vunpack.c.l.b16 %v232
    %v870 = vunpack.c.h.b16 %v232
    %v871 = vunpack.c.l.b16 %v233
    %v872 = vunpack.c.h.b16 %v233
    %v873 = vunpack.c.l.b16 %v234
    %v874 = vunpack.c.h.b16 %v234
    %v875 = vunpack.c.l.b16 %v235
    %v876 = vunpack.c.h.b16 %v235
    %v877 = vunpack.c.l.b16 %v236
    %v878 = vunpack.c.h.b16 %v236
    %v879 = vunpack.c.l.b16 %v237
    %v880 = vunpack.c.h.b16 %v237
    %v881 = vunpack.c.l.b16 %v238
    %v882 = vunpack.c.h.b16 %v238
    %v883 = vunpack.c.l.b16 %v239
    %v884 = vunpack.c.h.b16 %v239
    %v885 = vunpack.c.l.b16 %v240
    %v886 = vunpack.c.h.b16 %v240
    %v887 = vunpack.c.l.b16 %v241
    %v888 = vunpack.c.h.b16 %v241
    %v889 = vunpack.c.l.b16 %v242
    %v890 = vunpack.c.h.b16 %v242
    %v891 = vunpack.c.l.b16 %v243
    %v892 = vunpack.c.h.b16 %v243
    %v893 = vunpack.c.l.b16 %v244
    %v894 = vunpack.c.h.b16 %v244
    %v895 = vunpack.c.l.b16 %v245
    %v896 = vunpack.c.h.b16 %v245
    %v897 = vunpack.c.l.b16 %v246
    %v898 = vunpack.c.h.b16 %v246
    %v899 = vunpack.c.l.b16 %v247
    %v900 = vunpack.c.h.b16 %v247
    %v901 = vunpack.c.l.b16 %v248
    %v902 = vunpack.c.h.b16 %v248
    %v903 = vunpack.c.l.b16 %v249
    %v904 = vunpack.c.h.b16 %v249
    %v905 = vunpack.c.l.b16 %v250
    %v906 = vunpack.c.h.b16 %v250
    %v907 = vunpack.c.l.b16 %v251
    %v908 = vunpack.c.h.b16 %v251
    %v909 = vunpack.c.l.b16 %v252
    %v910 = vunpack.c.h.b16 %v252
    %v911 = vunpack.c.l.b16 %v253
    %v912 = vunpack.c.h.b16 %v253
    %v913 = vunpack.c.l.b16 %v254
    %v914 = vunpack.c.h.b16 %v254
    %v915 = vunpack.c.l.b16 %v255
    %v916 = vunpack.c.h.b16 %v255
    %v917 = vunpack.c.l.b16 %v256
    %v918 = vunpack.c.h.b16 %v256
    %v919 = vunpack.c.l.b16 %v257
    %v920 = vunpack.c.h.b16 %v257
    %v921 = vunpack.c.l.b16 %v258
    %v922 = vunpack.c.h.b16 %v258
    %v923 = vunpack.c.l.b16 %v259
    %v924 = vunpack.c.h.b16 %v259
    %v925 = vunpack.c.l.b16 %v260
    %v926 = vunpack.c.h.b16 %v260
    %v927 = vunpack.c.l.b16 %v261
    %v928 = vunpack.c.h.b16 %v261
    %v929 = vunpack.c.l.b16 %v262
    %v930 = vunpack.c.h.b16 %v262
    %v931 = vpack.c.b16 %v543, %v539
    %v932 = vpack.c.b16 %v544, %v540
    %v933 = vpack.c.b16 %v545, %v541
    %v934 = vpack.c.b16 %v546, %v542
    %v935 = vpack.c.b16 %v551, %v547
    %v936 = vpack.c.b16 %v552, %v548
    %v937 = vpack.c.b16 %v553, %v549
    %v938 = vpack.c.b16 %v554, %v550
    %v939 = vpack.c.b16 %v559, %v555
    %v940 = vpack.c.b16 %v560, %v556
    %v941 = vpack.c.b16 %v561, %v557
    %v942 = vpack.c.b16 %v562, %v558
    %v943 = vpack.c.b16 %v567, %v563
    %v944 = vpack.c.b16 %v568, %v564
    %v945 = vpack.c.b16 %v569, %v565
    %v946 = vpack.c.b16 %v570, %v566
    %v947 = vpack.c.b16 %v575, %v571
    %v948 = vpack.c.b16 %v576, %v572
    %v949 = vpack.c.b16 %v577, %v573
    %v950 = vpack.c.b16 %v578, %v574
    %v951 = vpack.c.b16 %v583, %v579
    %v952 = vpack.c.b16 %v584, %v580
    %v953 = vpack.c.b16 %v585, %v581
    %v954 = vpack.c.b16 %v586, %v582
    %v955 = vpack.c.b16 %v591, %v587
    %v956 = vpack.c.b16 %v592, %v588
    %v957 = vpack.c.b16 %v593, %v589
    %v958 = vpack.c.b16 %v594, %v590
    %v959 = vpack.c.b16 %v599, %v595
    %v960 = vpack.c.b16 %v600, %v596
    %v961 = vpack.c.b16 %v601, %v597
    %v962 = vpack.c.b16 %v602, %v598
    %v963 = vpack.c.b16 %v607, %v603
    %v964 = vpack.c.b16 %v608, %v604
    %v965 = vpack.c.b16 %v609, %v605
    %v966 = vpack.c.b16 %v610, %v606
    %v967 = vpack.c.b16 %v615, %v611
    %v968 = vpack.c.b16 %v616, %v612
    %v969 = vpack.c.b16 %v617, %v613
    %v970 = vpack.c.b16 %v618, %v614
    %v971 = vpack.c.b16 %v623, %v619
    %v972 = vpack.c.b16 %v624, %v620
    %v973 = vpack.c.b16 %v625, %v621
    %v974 = vpack.c.b16 %v626, %v622
    %v975 = vpack.c.b16 %v631, %v627
    %v976 = vpack.c.b16 %v632, %v628
    %v977 = vpack.c.b16 %v633, %v629
    %v978 = vpack.c.b16 %v634, %v630
    %v979 = vpack.c.b16 %v639, %v635
    %v980 = vpack.c.b16 %v640, %v636
    %v981 = vpack.c.b16 %v641, %v637
    %v982 = vpack.c.b16 %v642, %v638
    %v983 = vpack.c.b16 %v647, %v643
    %v984 = vpack.c.b16 %v648, %v644
    %v985 = vpack.c.b16 %v649, %v645
    %v986 = vpack.c.b16 %v650, %v646
    %v987 = vpack.c.b16 %v655, %v651
    %v988 = vpack.c.b16 %v656, %v652
    %v989 = vpack.c.b16 %v657, %v653
    %v990 = vpack.c.b16 %v658, %v654
    %v991 = vpack.c.b16 %v663, %v659
    %v992 = vpack.c.b16 %v664, %v660
    %v993 = vpack.c.b16 %v665, %v661
    %v994 = vpack.c.b16 %v666, %v662
    %v995 = vpack.c.b16 %v671, %v667
    %v996 = vpack.c.b16 %v672, %v668
    %v997 = vpack.c.b16 %v673, %v669
    %v998 = vpack.c.b16 %v674, %v670
    %v999 = vpack.c.b16 %v679, %v675
    %v1000 = vpack.c.b16 %v680, %v676
    %v1001 = vpack.c.b16 %v681, %v677
    %v1002 = vpack.c.b16 %v682, %v678
    %v1003 = vpack.c.b16 %v687, %v683
    %v1004 = vpack.c.b16 %v688, %v684
    %v1005 = vpack.c.b16 %v689, %v685
    %v1006 = vpack.c.b16 %v690, %v686
    %v1007 = vpack.c.b16 %v695, %v691
    %v1008 = vpack.c.b16 %v696, %v692
    %v1009 = vpack.c.b16 %v697, %v693
    %v1010 = vpack.c.b16 %v698, %v694
    %v1011 = vpack.c.b16 %v703, %v699
    %v1012 = vpack.c.b16 %v704, %v700
    %v1013 = vpack.c.b16 %v705, %v701
    %v1014 = vpack.c.b16 %v706, %v702
    %v1015 = vpack.c.b16 %v711, %v707
    %v1016 = vpack.c.b16 %v712, %v708
    %v1017 = vpack.c.b16 %v713, %v709
    %v1018 = vpack.c.b16 %v714, %v710
    %v1019 = vpack.c.b16 %v719, %v715
    %v1020 = vpack.c.b16 %v720, %v716
    %v1021 = vpack.c.b16 %v721, %v717
    %v1022 = vpack.c.b16 %v722, %v718
    %v1023 = vpack.c.b16 %v727, %v723
    %v1024 = vpack.c.b16 %v728, %v724
    %v1025 = vpack.c.b16 %v729, %v725
    %v1026 = vpack.c.b16 %v730, %v726
    %v1027 = vpack.c.b16 %v735, %v731
    %v1028 = vpack.c.b16 %v736, %v732
    %v1029 = vpack.c.b16 %v737, %v733
    %v1030 = vpack.c.b16 %v738, %v734
    %v1031 = vpack.c.b16 %v743, %v739
    %v1032 = vpack.c.b16 %v744, %v740
    %v1033 = vpack.c.b16 %v745, %v741
    %v1034 = vpack.c.b16 %v746, %v742
    %v1035 = vpack.c.b16 %v751, %v747
    %v1036 = vpack.c.b16 %v752, %v748
    %v1037 = vpack.c.b16 %v753, %v749
    %v1038 = vpack.c.b16 %v754, %v750
    %v1039 = vpack.c.b16 %v759, %v755
    %v1040 = vpack.c.b16 %v760, %v756
    %v1041 = vpack.c.b16 %v761, %v757
    %v1042 = vpack.c.b16 %v762, %v758
    %v1043 = vpack.c.b16 %v767, %v763
    %v1044 = vpack.c.b16 %v768, %v764
    %v1045 = vpack.c.b16 %v769, %v765
    %v1046 = vpack.c.b16 %v770, %v766
    %v1047 = vpack.c.b16 %v775, %v771
    %v1048 = vpack.c.b16 %v776, %v772
    %v1049 = vpack.c.b16 %v777, %v773
    %v1050 = vpack.c.b16 %v778, %v774
    %v1051 = vpack.c.b16 %v783, %v779
    %v1052 = vpack.c.b16 %v784, %v780
    %v1053 = vpack.c.b16 %v785, %v781
    %v1054 = vpack.c.b16 %v786, %v782
    %v1055 = vpack.c.b16 %v791, %v787
    %v1056 = vpack.c.b16 %v792, %v788
    %v1057 = vpack.c.b16 %v793, %v789
    %v1058 = vpack.c.b16 %v794, %v790
    %v1059 = vpack.c.b16 %v799, %v795
    %v1060 = vpack.c.b16 %v800, %v796
    %v1061 = vpack.c.b16 %v801, %v797
    %v1062 = vpack.c.b16 %v802, %v798
    %v1063 = vpack.c.b16 %v807, %v803
    %v1064 = vpack.c.b16 %v808, %v804
    %v1065 = vpack.c.b16 %v809, %v805
    %v1066 = vpack.c.b16 %v810, %v806
    %v1067 = vpack.c.b16 %v815, %v811
    %v1068 = vpack.c.b16 %v816, %v812
    %v1069 = vpack.c.b16 %v817, %v813
    %v1070 = vpack.c.b16 %v818, %v814
    %v1071 = vpack.c.b16 %v823, %v819
    %v1072 = vpack.c.b16 %v824, %v820
    %v1073 = vpack.c.b16 %v825, %v821
    %v1074 = vpack.c.b16 %v826, %v822
    %v1075 = vpack.c.b16 %v831, %v827
    %v1076 = vpack.c.b16 %v832, %v828
    %v1077 = vpack.c.b16 %v833, %v829
    %v1078 = vpack.c.b16 %v834, %v830
    %v1079 = vpack.c.b16 %v839, %v835
    %v1080 = vpack.c.b16 %v840, %v836
    %v1081 = vpack.c.b16 %v841, %v837
    %v1082 = vpack.c.b16 %v842, %v838
    %v1083 = vpack.c.b16 %v847, %v843
    %v1084 = vpack.c.b16 %v848, %v844
    %v1085 = vpack.c.b16 %v849, %v845
    %v1086 = vpack.c.b16 %v850, %v846
    %v1087 = vpack.c.b16 %v855, %v851
    %v1088 = vpack.c.b16 %v856, %v852
    %v1089 = vpack.c.b16 %v857, %v853
    %v1090 = vpack.c.b16 %v858, %v854
    %v1091 = vpack.c.b16 %v863, %v859
    %v1092 = vpack.c.b16 %v864, %v860
    %v1093 = vpack.c.b16 %v865, %v861
    %v1094 = vpack.c.b16 %v866, %v862
    %v1095 = vpack.c.b16 %v871, %v867
    %v1096 = vpack.c.b16 %v872, %v868
    %v1097 = vpack.c.b16 %v873, %v869
    %v1098 = vpack.c.b16 %v874, %v870
    %v1099 = vpack.c.b16 %v879, %v875
    %v1100 = vpack.c.b16 %v880, %v876
    %v1101 = vpack.c.b16 %v881, %v877
    %v1102 = vpack.c.b16 %v882, %v878
    %v1103 = vpack.c.b16 %v887, %v883
    %v1104 = vpack.c.b16 %v888, %v884
    %v1105 = vpack.c.b16 %v889, %v885
    %v1106 = vpack.c.b16 %v890, %v886
    %v1107 = vpack.c.b16 %v895, %v891
    %v1108 = vpack.c.b16 %v896, %v892
    %v1109 = vpack.c.b16 %v897, %v893
    %v1110 = vpack.c.b16 %v898, %v894
    %v1111 = vpack.c.b16 %v903, %v899
    %v1112 = vpack.c.b16 %v904, %v900
    %v1113 = vpack.c.b16 %v905, %v901
    %v1114 = vpack.c.b16 %v906, %v902
    %v1115 = vpack.c.b16 %v911, %v907
    %v1116 = vpack.c.b16 %v912, %v908
    %v1117 = vpack.c.b16 %v913, %v909
    %v1118 = vpack.c.b16 %v914, %v910
    %v1119 = vpack.c.b16 %v919, %v915
    %v1120 = vpack.c.b16 %v920, %v916
    %v1121 = vpack.c.b16 %v921, %v917
    %v1122 = vpack.c.b16 %v922, %v918
    %v1123 = vpack.c.b16 %v927, %v923
    %v1124 = vpack.c.b16 %v928, %v924
    %v1125 = vpack.c.b16 %v929, %v925
    %v1126 = vpack.c.b16 %v930, %v926
    %v1324 = vsel %vm287, %v64, 0
    %1326 = vmatpush.bf16.msra.mxu0 %v959
    %1327 = vmatpush.bf16.msra.mxu0 %v955
    %1328 = vmatpush.bf16.msra.mxu0 %v951
    %1329 = vmatpush.bf16.msra.mxu0 %v947
    %1330 = vmatpush.bf16.msra.mxu0 %v943
    %1331 = vmatpush.bf16.msra.mxu0 %v939
    %1332 = vmatpush.bf16.msra.mxu0 %v935
    %1333 = vmatpush.bf16.msra.mxu0 %v931
    %1334 = vmatmul.bf16.gmra.mxu0 %v58
    %v1335 = vpop.f32.mrf.mxu0
    %v1336 = vadd.f32 %v301, %v1335
    %v1337 = vpop.f32.mrf.mxu0
    %1338 = vdwg.mxu0
    %1339 = vmatpush.bf16.msra.mxu0 %v991
    %1340 = vmatpush.bf16.msra.mxu0 %v987
    %1341 = vmatpush.bf16.msra.mxu0 %v983
    %1342 = vmatpush.bf16.msra.mxu0 %v979
    %1343 = vmatpush.bf16.msra.mxu0 %v975
    %1344 = vmatpush.bf16.msra.mxu0 %v971
    %1345 = vmatpush.bf16.msra.mxu0 %v967
    %1346 = vmatpush.bf16.msra.mxu0 %v963
    %1347 = vmatmul.bf16.gmra.mxu0 %v59
    %v1348 = vpop.f32.mrf.mxu0
    %v1349 = vadd.f32 %v1336, %v1348
    %v1350 = vpop.f32.mrf.mxu0
    %1351 = vdwg.mxu0
    %1352 = vmatpush.bf16.msra.mxu0 %v1023
    %1353 = vmatpush.bf16.msra.mxu0 %v1019
    %1354 = vmatpush.bf16.msra.mxu0 %v1015
    %1355 = vmatpush.bf16.msra.mxu0 %v1011
    %1356 = vmatpush.bf16.msra.mxu0 %v1007
    %1357 = vmatpush.bf16.msra.mxu0 %v1003
    %1358 = vmatpush.bf16.msra.mxu0 %v999
    %1359 = vmatpush.bf16.msra.mxu0 %v995
    %1360 = vmatmul.bf16.gmra.mxu0 %v60
    %v1361 = vpop.f32.mrf.mxu0
    %v1362 = vadd.f32 %v1349, %v1361
    %v1363 = vpop.f32.mrf.mxu0
    %1364 = vdwg.mxu0
    %1365 = vmatpush.bf16.msra.mxu0 %v1055
    %1366 = vmatpush.bf16.msra.mxu0 %v1051
    %1367 = vmatpush.bf16.msra.mxu0 %v1047
    %1368 = vmatpush.bf16.msra.mxu0 %v1043
    %1369 = vmatpush.bf16.msra.mxu0 %v1039
    %1370 = vmatpush.bf16.msra.mxu0 %v1035
    %1371 = vmatpush.bf16.msra.mxu0 %v1031
    %1372 = vmatpush.bf16.msra.mxu0 %v1027
    %1373 = vmatmul.bf16.gmra.mxu0 %v61
    %v1374 = vpop.f32.mrf.mxu0
    %v1375 = vadd.f32 %v1362, %v1374
    %v1376 = vpop.f32.mrf.mxu0
    %1377 = vdwg.mxu0
    %1378 = vmatpush.bf16.msra.mxu0 %v1087
    %1379 = vmatpush.bf16.msra.mxu0 %v1083
    %1380 = vmatpush.bf16.msra.mxu0 %v1079
    %1381 = vmatpush.bf16.msra.mxu0 %v1075
    %1382 = vmatpush.bf16.msra.mxu0 %v1071
    %1383 = vmatpush.bf16.msra.mxu0 %v1067
    %1384 = vmatpush.bf16.msra.mxu0 %v1063
    %1385 = vmatpush.bf16.msra.mxu0 %v1059
    %1386 = vmatmul.bf16.gmra.mxu0 %v62
    %v1387 = vpop.f32.mrf.mxu0
    %v1388 = vadd.f32 %v1375, %v1387
    %v1389 = vpop.f32.mrf.mxu0
    %1390 = vdwg.mxu0
    %1391 = vmatpush.bf16.msra.mxu0 %v1119
    %1392 = vmatpush.bf16.msra.mxu0 %v1115
    %1393 = vmatpush.bf16.msra.mxu0 %v1111
    %1394 = vmatpush.bf16.msra.mxu0 %v1107
    %1395 = vmatpush.bf16.msra.mxu0 %v1103
    %1396 = vmatpush.bf16.msra.mxu0 %v1099
    %1397 = vmatpush.bf16.msra.mxu0 %v1095
    %1398 = vmatpush.bf16.msra.mxu0 %v1091
    %1399 = vmatmul.bf16.gmra.mxu0 %v63
    %v1400 = vpop.f32.mrf.mxu0
    %v1401 = vadd.f32 %v1388, %v1400
    %v1402 = vpop.f32.mrf.mxu0
    %1403 = vdwg.mxu0
    %1404 = vmatpush.bf16.msra.mxu0 0
    %1405 = vmatpush.bf16.msra.mxu0 0
    %1406 = vmatpush.bf16.msra.mxu0 0
    %1407 = vmatpush.bf16.msra.mxu0 0
    %1408 = vmatpush.bf16.msra.mxu0 0
    %1409 = vmatpush.bf16.msra.mxu0 0
    %1410 = vmatpush.bf16.msra.mxu0 0
    %1411 = vmatpush.bf16.msra.mxu0 %v1123
    %1412 = vmatmul.bf16.gmra.mxu0 %v1324
    %v1413 = vpop.f32.mrf.mxu0
    %v1414 = vadd.f32 %v1401, %v1413
    %v1415 = vpop.f32.mrf.mxu0
    %1416 = vdwg.mxu0
    %1417 = vmatpush.bf16.msra.mxu0 %v960
    %1418 = vmatpush.bf16.msra.mxu0 %v956
    %1419 = vmatpush.bf16.msra.mxu0 %v952
    %1420 = vmatpush.bf16.msra.mxu0 %v948
    %1421 = vmatpush.bf16.msra.mxu0 %v944
    %1422 = vmatpush.bf16.msra.mxu0 %v940
    %1423 = vmatpush.bf16.msra.mxu0 %v936
    %1424 = vmatpush.bf16.msra.mxu0 %v932
    %1425 = vmatmul.bf16.gmra.mxu0 %v58
    %v1426 = vpop.f32.mrf.mxu0
    %v1427 = vadd.f32 %v314, %v1426
    %v1428 = vpop.f32.mrf.mxu0
    %1429 = vdwg.mxu0
    %1430 = vmatpush.bf16.msra.mxu0 %v992
    %1431 = vmatpush.bf16.msra.mxu0 %v988
    %1432 = vmatpush.bf16.msra.mxu0 %v984
    %1433 = vmatpush.bf16.msra.mxu0 %v980
    %1434 = vmatpush.bf16.msra.mxu0 %v976
    %1435 = vmatpush.bf16.msra.mxu0 %v972
    %1436 = vmatpush.bf16.msra.mxu0 %v968
    %1437 = vmatpush.bf16.msra.mxu0 %v964
    %1438 = vmatmul.bf16.gmra.mxu0 %v59
    %v1439 = vpop.f32.mrf.mxu0
    %v1440 = vadd.f32 %v1427, %v1439
    %v1441 = vpop.f32.mrf.mxu0
    %1442 = vdwg.mxu0
    %1443 = vmatpush.bf16.msra.mxu0 %v1024
    %1444 = vmatpush.bf16.msra.mxu0 %v1020
    %1445 = vmatpush.bf16.msra.mxu0 %v1016
    %1446 = vmatpush.bf16.msra.mxu0 %v1012
    %1447 = vmatpush.bf16.msra.mxu0 %v1008
    %1448 = vmatpush.bf16.msra.mxu0 %v1004
    %1449 = vmatpush.bf16.msra.mxu0 %v1000
    %1450 = vmatpush.bf16.msra.mxu0 %v996
    %1451 = vmatmul.bf16.gmra.mxu0 %v60
    %v1452 = vpop.f32.mrf.mxu0
    %v1453 = vadd.f32 %v1440, %v1452
    %v1454 = vpop.f32.mrf.mxu0
    %1455 = vdwg.mxu0
    %1456 = vmatpush.bf16.msra.mxu0 %v1056
    %1457 = vmatpush.bf16.msra.mxu0 %v1052
    %1458 = vmatpush.bf16.msra.mxu0 %v1048
    %1459 = vmatpush.bf16.msra.mxu0 %v1044
    %1460 = vmatpush.bf16.msra.mxu0 %v1040
    %1461 = vmatpush.bf16.msra.mxu0 %v1036
    %1462 = vmatpush.bf16.msra.mxu0 %v1032
    %1463 = vmatpush.bf16.msra.mxu0 %v1028
    %1464 = vmatmul.bf16.gmra.mxu0 %v61
    %v1465 = vpop.f32.mrf.mxu0
    %v1466 = vadd.f32 %v1453, %v1465
    %v1467 = vpop.f32.mrf.mxu0
    %1468 = vdwg.mxu0
    %1469 = vmatpush.bf16.msra.mxu0 %v1088
    %1470 = vmatpush.bf16.msra.mxu0 %v1084
    %1471 = vmatpush.bf16.msra.mxu0 %v1080
    %1472 = vmatpush.bf16.msra.mxu0 %v1076
    %1473 = vmatpush.bf16.msra.mxu0 %v1072
    %1474 = vmatpush.bf16.msra.mxu0 %v1068
    %1475 = vmatpush.bf16.msra.mxu0 %v1064
    %1476 = vmatpush.bf16.msra.mxu0 %v1060
    %1477 = vmatmul.bf16.gmra.mxu0 %v62
    %v1478 = vpop.f32.mrf.mxu0
    %v1479 = vadd.f32 %v1466, %v1478
    %v1480 = vpop.f32.mrf.mxu0
    %1481 = vdwg.mxu0
    %1482 = vmatpush.bf16.msra.mxu0 %v1120
    %1483 = vmatpush.bf16.msra.mxu0 %v1116
    %1484 = vmatpush.bf16.msra.mxu0 %v1112
    %1485 = vmatpush.bf16.msra.mxu0 %v1108
    %1486 = vmatpush.bf16.msra.mxu0 %v1104
    %1487 = vmatpush.bf16.msra.mxu0 %v1100
    %1488 = vmatpush.bf16.msra.mxu0 %v1096
    %1489 = vmatpush.bf16.msra.mxu0 %v1092
    %1490 = vmatmul.bf16.gmra.mxu0 %v63
    %v1491 = vpop.f32.mrf.mxu0
    %v1492 = vadd.f32 %v1479, %v1491
    %v1493 = vpop.f32.mrf.mxu0
    %1494 = vdwg.mxu0
    %1495 = vmatpush.bf16.msra.mxu0 0
    %1496 = vmatpush.bf16.msra.mxu0 0
    %1497 = vmatpush.bf16.msra.mxu0 0
    %1498 = vmatpush.bf16.msra.mxu0 0
    %1499 = vmatpush.bf16.msra.mxu0 0
    %1500 = vmatpush.bf16.msra.mxu0 0
    %1501 = vmatpush.bf16.msra.mxu0 0
    %1502 = vmatpush.bf16.msra.mxu0 %v1124
    %1503 = vmatmul.bf16.gmra.mxu0 %v1324
    %v1504 = vpop.f32.mrf.mxu0
    %v1505 = vadd.f32 %v1492, %v1504
    %v1506 = vpop.f32.mrf.mxu0
    %1507 = vdwg.mxu0
    %1508 = vmatpush.bf16.msra.mxu0 %v961
    %1509 = vmatpush.bf16.msra.mxu0 %v957
    %1510 = vmatpush.bf16.msra.mxu0 %v953
    %1511 = vmatpush.bf16.msra.mxu0 %v949
    %1512 = vmatpush.bf16.msra.mxu0 %v945
    %1513 = vmatpush.bf16.msra.mxu0 %v941
    %1514 = vmatpush.bf16.msra.mxu0 %v937
    %1515 = vmatpush.bf16.msra.mxu0 %v933
    %1516 = vmatmul.bf16.gmra.mxu0 %v58
    %v1517 = vpop.f32.mrf.mxu0
    %v1518 = vadd.f32 %v327, %v1517
    %v1519 = vpop.f32.mrf.mxu0
    %1520 = vdwg.mxu0
    %1521 = vmatpush.bf16.msra.mxu0 %v993
    %1522 = vmatpush.bf16.msra.mxu0 %v989
    %1523 = vmatpush.bf16.msra.mxu0 %v985
    %1524 = vmatpush.bf16.msra.mxu0 %v981
    %1525 = vmatpush.bf16.msra.mxu0 %v977
    %1526 = vmatpush.bf16.msra.mxu0 %v973
    %1527 = vmatpush.bf16.msra.mxu0 %v969
    %1528 = vmatpush.bf16.msra.mxu0 %v965
    %1529 = vmatmul.bf16.gmra.mxu0 %v59
    %v1530 = vpop.f32.mrf.mxu0
    %v1531 = vadd.f32 %v1518, %v1530
    %v1532 = vpop.f32.mrf.mxu0
    %1533 = vdwg.mxu0
    %1534 = vmatpush.bf16.msra.mxu0 %v1025
    %1535 = vmatpush.bf16.msra.mxu0 %v1021
    %1536 = vmatpush.bf16.msra.mxu0 %v1017
    %1537 = vmatpush.bf16.msra.mxu0 %v1013
    %1538 = vmatpush.bf16.msra.mxu0 %v1009
    %1539 = vmatpush.bf16.msra.mxu0 %v1005
    %1540 = vmatpush.bf16.msra.mxu0 %v1001
    %1541 = vmatpush.bf16.msra.mxu0 %v997
    %1542 = vmatmul.bf16.gmra.mxu0 %v60
    %v1543 = vpop.f32.mrf.mxu0
    %v1544 = vadd.f32 %v1531, %v1543
    %v1545 = vpop.f32.mrf.mxu0
    %1546 = vdwg.mxu0
    %1547 = vmatpush.bf16.msra.mxu0 %v1057
    %1548 = vmatpush.bf16.msra.mxu0 %v1053
    %1549 = vmatpush.bf16.msra.mxu0 %v1049
    %1550 = vmatpush.bf16.msra.mxu0 %v1045
    %1551 = vmatpush.bf16.msra.mxu0 %v1041
    %1552 = vmatpush.bf16.msra.mxu0 %v1037
    %1553 = vmatpush.bf16.msra.mxu0 %v1033
    %1554 = vmatpush.bf16.msra.mxu0 %v1029
    %1555 = vmatmul.bf16.gmra.mxu0 %v61
    %v1556 = vpop.f32.mrf.mxu0
    %v1557 = vadd.f32 %v1544, %v1556
    %v1558 = vpop.f32.mrf.mxu0
    %1559 = vdwg.mxu0
    %1560 = vmatpush.bf16.msra.mxu0 %v1089
    %1561 = vmatpush.bf16.msra.mxu0 %v1085
    %1562 = vmatpush.bf16.msra.mxu0 %v1081
    %1563 = vmatpush.bf16.msra.mxu0 %v1077
    %1564 = vmatpush.bf16.msra.mxu0 %v1073
    %1565 = vmatpush.bf16.msra.mxu0 %v1069
    %1566 = vmatpush.bf16.msra.mxu0 %v1065
    %1567 = vmatpush.bf16.msra.mxu0 %v1061
    %1568 = vmatmul.bf16.gmra.mxu0 %v62
    %v1569 = vpop.f32.mrf.mxu0
    %v1570 = vadd.f32 %v1557, %v1569
    %v1571 = vpop.f32.mrf.mxu0
    %1572 = vdwg.mxu0
    %1573 = vmatpush.bf16.msra.mxu0 %v1121
    %1574 = vmatpush.bf16.msra.mxu0 %v1117
    %1575 = vmatpush.bf16.msra.mxu0 %v1113
    %1576 = vmatpush.bf16.msra.mxu0 %v1109
    %1577 = vmatpush.bf16.msra.mxu0 %v1105
    %1578 = vmatpush.bf16.msra.mxu0 %v1101
    %1579 = vmatpush.bf16.msra.mxu0 %v1097
    %1580 = vmatpush.bf16.msra.mxu0 %v1093
    %1581 = vmatmul.bf16.gmra.mxu0 %v63
    %v1582 = vpop.f32.mrf.mxu0
    %v1583 = vadd.f32 %v1570, %v1582
    %v1584 = vpop.f32.mrf.mxu0
    %1585 = vdwg.mxu0
    %1586 = vmatpush.bf16.msra.mxu0 0
    %1587 = vmatpush.bf16.msra.mxu0 0
    %1588 = vmatpush.bf16.msra.mxu0 0
    %1589 = vmatpush.bf16.msra.mxu0 0
    %1590 = vmatpush.bf16.msra.mxu0 0
    %1591 = vmatpush.bf16.msra.mxu0 0
    %1592 = vmatpush.bf16.msra.mxu0 0
    %1593 = vmatpush.bf16.msra.mxu0 %v1125
    %1594 = vmatmul.bf16.gmra.mxu0 %v1324
    %v1595 = vpop.f32.mrf.mxu0
    %v1596 = vadd.f32 %v1583, %v1595
    %v1597 = vpop.f32.mrf.mxu0
    %1598 = vdwg.mxu0
    %1599 = vmatpush.bf16.msra.mxu0 %v962
    %1600 = vmatpush.bf16.msra.mxu0 %v958
    %1601 = vmatpush.bf16.msra.mxu0 %v954
    %1602 = vmatpush.bf16.msra.mxu0 %v950
    %1603 = vmatpush.bf16.msra.mxu0 %v946
    %1604 = vmatpush.bf16.msra.mxu0 %v942
    %1605 = vmatpush.bf16.msra.mxu0 %v938
    %1606 = vmatpush.bf16.msra.mxu0 %v934
    %1607 = vmatmul.bf16.gmra.mxu0 %v58
    %v1608 = vpop.f32.mrf.mxu0
    %v1609 = vadd.f32 %v340, %v1608
    %v1610 = vpop.f32.mrf.mxu0
    %1611 = vdwg.mxu0
    %1612 = vmatpush.bf16.msra.mxu0 %v994
    %1613 = vmatpush.bf16.msra.mxu0 %v990
    %1614 = vmatpush.bf16.msra.mxu0 %v986
    %1615 = vmatpush.bf16.msra.mxu0 %v982
    %1616 = vmatpush.bf16.msra.mxu0 %v978
    %1617 = vmatpush.bf16.msra.mxu0 %v974
    %1618 = vmatpush.bf16.msra.mxu0 %v970
    %1619 = vmatpush.bf16.msra.mxu0 %v966
    %1620 = vmatmul.bf16.gmra.mxu0 %v59
    %v1621 = vpop.f32.mrf.mxu0
    %v1622 = vadd.f32 %v1609, %v1621
    %v1623 = vpop.f32.mrf.mxu0
    %1624 = vdwg.mxu0
    %1625 = vmatpush.bf16.msra.mxu0 %v1026
    %1626 = vmatpush.bf16.msra.mxu0 %v1022
    %1627 = vmatpush.bf16.msra.mxu0 %v1018
    %1628 = vmatpush.bf16.msra.mxu0 %v1014
    %1629 = vmatpush.bf16.msra.mxu0 %v1010
    %1630 = vmatpush.bf16.msra.mxu0 %v1006
    %1631 = vmatpush.bf16.msra.mxu0 %v1002
    %1632 = vmatpush.bf16.msra.mxu0 %v998
    %1633 = vmatmul.bf16.gmra.mxu0 %v60
    %v1634 = vpop.f32.mrf.mxu0
    %v1635 = vadd.f32 %v1622, %v1634
    %v1636 = vpop.f32.mrf.mxu0
    %1637 = vdwg.mxu0
    %1638 = vmatpush.bf16.msra.mxu0 %v1058
    %1639 = vmatpush.bf16.msra.mxu0 %v1054
    %1640 = vmatpush.bf16.msra.mxu0 %v1050
    %1641 = vmatpush.bf16.msra.mxu0 %v1046
    %1642 = vmatpush.bf16.msra.mxu0 %v1042
    %1643 = vmatpush.bf16.msra.mxu0 %v1038
    %1644 = vmatpush.bf16.msra.mxu0 %v1034
    %1645 = vmatpush.bf16.msra.mxu0 %v1030
    %1646 = vmatmul.bf16.gmra.mxu0 %v61
    %v1647 = vpop.f32.mrf.mxu0
    %v1648 = vadd.f32 %v1635, %v1647
    %v1649 = vpop.f32.mrf.mxu0
    %1650 = vdwg.mxu0
    %1651 = vmatpush.bf16.msra.mxu0 %v1090
    %1652 = vmatpush.bf16.msra.mxu0 %v1086
    %1653 = vmatpush.bf16.msra.mxu0 %v1082
    %1654 = vmatpush.bf16.msra.mxu0 %v1078
    %1655 = vmatpush.bf16.msra.mxu0 %v1074
    %1656 = vmatpush.bf16.msra.mxu0 %v1070
    %1657 = vmatpush.bf16.msra.mxu0 %v1066
    %1658 = vmatpush.bf16.msra.mxu0 %v1062
    %1659 = vmatmul.bf16.gmra.mxu0 %v62
    %v1660 = vpop.f32.mrf.mxu0
    %v1661 = vadd.f32 %v1648, %v1660
    %v1662 = vpop.f32.mrf.mxu0
    %1663 = vdwg.mxu0
    %1664 = vmatpush.bf16.msra.mxu0 %v1122
    %1665 = vmatpush.bf16.msra.mxu0 %v1118
    %1666 = vmatpush.bf16.msra.mxu0 %v1114
    %1667 = vmatpush.bf16.msra.mxu0 %v1110
    %1668 = vmatpush.bf16.msra.mxu0 %v1106
    %1669 = vmatpush.bf16.msra.mxu0 %v1102
    %1670 = vmatpush.bf16.msra.mxu0 %v1098
    %1671 = vmatpush.bf16.msra.mxu0 %v1094
    %1672 = vmatmul.bf16.gmra.mxu0 %v63
    %v1673 = vpop.f32.mrf.mxu0
    %v1674 = vadd.f32 %v1661, %v1673
    %v1675 = vpop.f32.mrf.mxu0
    %1676 = vdwg.mxu0
    %1677 = vmatpush.bf16.msra.mxu0 0
    %1678 = vmatpush.bf16.msra.mxu0 0
    %1679 = vmatpush.bf16.msra.mxu0 0
    %1680 = vmatpush.bf16.msra.mxu0 0
    %1681 = vmatpush.bf16.msra.mxu0 0
    %1682 = vmatpush.bf16.msra.mxu0 0
    %1683 = vmatpush.bf16.msra.mxu0 0
    %1684 = vmatpush.bf16.msra.mxu0 %v1126
    %1685 = vmatmul.bf16.gmra.mxu0 %v1324
    %v1686 = vpop.f32.mrf.mxu0
    %v1687 = vadd.f32 %v1674, %v1686
    %v1688 = vpop.f32.mrf.mxu0
    %1689 = vdwg.mxu0
    %v1690 = vld [vmem:[%s4] sm:$0xf]
    %v1692 = vperm.slane %v1690, 0
    %v1693 = vperm.slane %v1690, 1
    %v1694 = vperm.slane %v1690, 2
    %v1695 = vperm.slane %v1690, 3
    %v1700 = vadd.f32 %v1414, %v1692
    %v1701 = vadd.f32 %v1505, %v1693
    %v1702 = vadd.f32 %v1596, %v1694
    %v1703 = vadd.f32 %v1687, %v1695
    %v1704 = vmax.f32 %v1700, 0.0
    %v1705 = vmax.f32 %v1701, 0.0
    %v1706 = vmax.f32 %v1702, 0.0
    %v1707 = vmax.f32 %v1703, 0.0
    %v1708 = vpack.c.bf16 %v1704, %v1704
    %v1709 = vpack.c.bf16 %v1705, %v1705
    %v1710 = vpack.c.bf16 %v1706, %v1706
    %v1711 = vpack.c.bf16 %v1707, %v1707
    %v1712 = vld [vmem:[%s5] sm:$0xff]
    %v1713 = vld [vmem:[%s5 + $0x8] sm:$0xff]
    %v1714 = vld [vmem:[%s5 + $0x10] sm:$0xff]
    %v1715 = vld [vmem:[%s5 + $0x18] sm:$0xff]
    %v1716 = vld [vmem:[%s5 + $0x20] sm:$0xff]
    %v1717 = vld [vmem:[%s5 + $0x28] sm:$0xff]
    %v1718 = vld [vmem:[%s5 + $0x30] sm:$0xff]
    %v1719 = vld [vmem:[%s5 + $0x38] sm:$0xff]
    %v1720 = vld [vmem:[%s5 + $0x40] sm:$0xff]
    %v1721 = vld [vmem:[%s5 + $0x48] sm:$0xff]
    %v1722 = vld [vmem:[%s5 + $0x50] sm:$0xff]
    %v1723 = vld [vmem:[%s5 + $0x58] sm:$0xff]
    %v1724 = vld [vmem:[%s5 + $0x60] sm:$0xff]
    %v1725 = vld [vmem:[%s5 + $0x68] sm:$0xff]
    %v1726 = vld [vmem:[%s5 + $0x70] sm:$0xff]
    %v1727 = vld [vmem:[%s5 + $0x78] sm:$0xff]
    %v1728 = vld [vmem:[%s5 + $0x80] sm:$0xff]
    %v1729 = vld [vmem:[%s5 + $0x88] sm:$0xff]
    %v1730 = vld [vmem:[%s5 + $0x90] sm:$0xff]
    %v1731 = vld [vmem:[%s5 + $0x98] sm:$0xff]
    %v1732 = vld [vmem:[%s5 + $0xa0] sm:$0xff]
    %v1733 = vld [vmem:[%s5 + $0xa8] sm:$0xff]
    %v1734 = vld [vmem:[%s5 + $0xb0] sm:$0xff]
    %v1735 = vld [vmem:[%s5 + $0xb8] sm:$0xff]
    %v1736 = vld [vmem:[%s5 + $0xc0] sm:$0xff]
    %v1737 = vld [vmem:[%s5 + $0xc8] sm:$0xff]
    %v1738 = vld [vmem:[%s5 + $0xd0] sm:$0xff]
    %v1739 = vld [vmem:[%s5 + $0xd8] sm:$0xff]
    %v1740 = vld [vmem:[%s5 + $0xe0] sm:$0xff]
    %v1741 = vld [vmem:[%s5 + $0xe8] sm:$0xff]
    %v1742 = vld [vmem:[%s5 + $0xf0] sm:$0xff]
    %v1743 = vld [vmem:[%s5 + $0xf8] sm:$0xff]
    %v1744 = vld [vmem:[%s5 + $0x100] sm:$0xff]
    %v1745 = vld [vmem:[%s5 + $0x108] sm:$0xff]
    %v1746 = vld [vmem:[%s5 + $0x110] sm:$0xff]
    %v1747 = vld [vmem:[%s5 + $0x118] sm:$0xff]
    %v1748 = vld [vmem:[%s5 + $0x120] sm:$0xff]
    %v1749 = vld [vmem:[%s5 + $0x128] sm:$0xff]
    %v1750 = vld [vmem:[%s5 + $0x130] sm:$0xff]
    %v1751 = vld [vmem:[%s5 + $0x138] sm:$0xff]
    %v1752 = vld [vmem:[%s5 + $0x140] sm:$0xff]
    %v1753 = vld [vmem:[%s5 + $0x148] sm:$0xff]
    %v1754 = vld [vmem:[%s5 + $0x150] sm:$0xff]
    %v1755 = vld [vmem:[%s5 + $0x158] sm:$0xff]
    %v1756 = vld [vmem:[%s5 + $0x160] sm:$0xff]
    %v1757 = vld [vmem:[%s5 + $0x168] sm:$0xff]
    %v1758 = vld [vmem:[%s5 + $0x170] sm:$0xff]
    %v1759 = vld [vmem:[%s5 + $0x178] sm:$0xff]
    %v1760 = vld [vmem:[%s5 + $0x180] sm:$0xff]
    %v1761 = vld [vmem:[%s5 + $0x188] sm:$0xff]
    %v1762 = vld [vmem:[%s5 + $0x190] sm:$0xff]
    %v1763 = vld [vmem:[%s5 + $0x198] sm:$0xff]
    %v1764 = vld [vmem:[%s5 + $0x1a0] sm:$0xff]
    %v1765 = vld [vmem:[%s5 + $0x1a8] sm:$0xff]
    %v1766 = vld [vmem:[%s5 + $0x1b0] sm:$0xff]
    %v1767 = vld [vmem:[%s5 + $0x1b8] sm:$0xff]
    %v1768 = vld [vmem:[%s5 + $0x1c0] sm:$0xff]
    %v1769 = vld [vmem:[%s5 + $0x1c8] sm:$0xff]
    %v1770 = vld [vmem:[%s5 + $0x1d0] sm:$0xff]
    %v1771 = vld [vmem:[%s5 + $0x1d8] sm:$0xff]
    %v1772 = vld [vmem:[%s5 + $0x1e0] sm:$0xff]
    %v1773 = vld [vmem:[%s5 + $0x1e8] sm:$0xff]
    %v1774 = vld [vmem:[%s5 + $0x1f0] sm:$0xff]
    %v1775 = vld [vmem:[%s5 + $0x1f8] sm:$0xff]
    %v1776 = vld [vmem:[%s6] sm:$0x3]
    %v1778 = vperm.slane %v1776, 0
    %v1779 = vperm.slane %v1776, 1
    %v1846 = vunpack.c.l.b16 %v1712
    %v1847 = vunpack.c.h.b16 %v1712
    %v1848 = vunpack.c.l.b16 %v1713
    %v1849 = vunpack.c.h.b16 %v1713
    %v1850 = vunpack.c.l.b16 %v1714
    %v1851 = vunpack.c.h.b16 %v1714
    %v1852 = vunpack.c.l.b16 %v1715
    %v1853 = vunpack.c.h.b16 %v1715
    %v1854 = vunpack.c.l.b16 %v1716
    %v1855 = vunpack.c.h.b16 %v1716
    %v1856 = vunpack.c.l.b16 %v1717
    %v1857 = vunpack.c.h.b16 %v1717
    %v1858 = vunpack.c.l.b16 %v1718
    %v1859 = vunpack.c.h.b16 %v1718
    %v1860 = vunpack.c.l.b16 %v1719
    %v1861 = vunpack.c.h.b16 %v1719
    %v1862 = vunpack.c.l.b16 %v1720
    %v1863 = vunpack.c.h.b16 %v1720
    %v1864 = vunpack.c.l.b16 %v1721
    %v1865 = vunpack.c.h.b16 %v1721
    %v1866 = vunpack.c.l.b16 %v1722
    %v1867 = vunpack.c.h.b16 %v1722
    %v1868 = vunpack.c.l.b16 %v1723
    %v1869 = vunpack.c.h.b16 %v1723
    %v1870 = vunpack.c.l.b16 %v1724
    %v1871 = vunpack.c.h.b16 %v1724
    %v1872 = vunpack.c.l.b16 %v1725
    %v1873 = vunpack.c.h.b16 %v1725
    %v1874 = vunpack.c.l.b16 %v1726
    %v1875 = vunpack.c.h.b16 %v1726
    %v1876 = vunpack.c.l.b16 %v1727
    %v1877 = vunpack.c.h.b16 %v1727
    %v1878 = vunpack.c.l.b16 %v1728
    %v1879 = vunpack.c.h.b16 %v1728
    %v1880 = vunpack.c.l.b16 %v1729
    %v1881 = vunpack.c.h.b16 %v1729
    %v1882 = vunpack.c.l.b16 %v1730
    %v1883 = vunpack.c.h.b16 %v1730
    %v1884 = vunpack.c.l.b16 %v1731
    %v1885 = vunpack.c.h.b16 %v1731
    %v1886 = vunpack.c.l.b16 %v1732
    %v1887 = vunpack.c.h.b16 %v1732
    %v1888 = vunpack.c.l.b16 %v1733
    %v1889 = vunpack.c.h.b16 %v1733
    %v1890 = vunpack.c.l.b16 %v1734
    %v1891 = vunpack.c.h.b16 %v1734
    %v1892 = vunpack.c.l.b16 %v1735
    %v1893 = vunpack.c.h.b16 %v1735
    %v1894 = vunpack.c.l.b16 %v1736
    %v1895 = vunpack.c.h.b16 %v1736
    %v1896 = vunpack.c.l.b16 %v1737
    %v1897 = vunpack.c.h.b16 %v1737
    %v1898 = vunpack.c.l.b16 %v1738
    %v1899 = vunpack.c.h.b16 %v1738
    %v1900 = vunpack.c.l.b16 %v1739
    %v1901 = vunpack.c.h.b16 %v1739
    %v1902 = vunpack.c.l.b16 %v1740
    %v1903 = vunpack.c.h.b16 %v1740
    %v1904 = vunpack.c.l.b16 %v1741
    %v1905 = vunpack.c.h.b16 %v1741
    %v1906 = vunpack.c.l.b16 %v1742
    %v1907 = vunpack.c.h.b16 %v1742
    %v1908 = vunpack.c.l.b16 %v1743
    %v1909 = vunpack.c.h.b16 %v1743
    %v1910 = vunpack.c.l.b16 %v1744
    %v1911 = vunpack.c.h.b16 %v1744
    %v1912 = vunpack.c.l.b16 %v1745
    %v1913 = vunpack.c.h.b16 %v1745
    %v1914 = vunpack.c.l.b16 %v1746
    %v1915 = vunpack.c.h.b16 %v1746
    %v1916 = vunpack.c.l.b16 %v1747
    %v1917 = vunpack.c.h.b16 %v1747
    %v1918 = vunpack.c.l.b16 %v1748
    %v1919 = vunpack.c.h.b16 %v1748
    %v1920 = vunpack.c.l.b16 %v1749
    %v1921 = vunpack.c.h.b16 %v1749
    %v1922 = vunpack.c.l.b16 %v1750
    %v1923 = vunpack.c.h.b16 %v1750
    %v1924 = vunpack.c.l.b16 %v1751
    %v1925 = vunpack.c.h.b16 %v1751
    %v1926 = vunpack.c.l.b16 %v1752
    %v1927 = vunpack.c.h.b16 %v1752
    %v1928 = vunpack.c.l.b16 %v1753
    %v1929 = vunpack.c.h.b16 %v1753
    %v1930 = vunpack.c.l.b16 %v1754
    %v1931 = vunpack.c.h.b16 %v1754
    %v1932 = vunpack.c.l.b16 %v1755
    %v1933 = vunpack.c.h.b16 %v1755
    %v1934 = vunpack.c.l.b16 %v1756
    %v1935 = vunpack.c.h.b16 %v1756
    %v1936 = vunpack.c.l.b16 %v1757
    %v1937 = vunpack.c.h.b16 %v1757
    %v1938 = vunpack.c.l.b16 %v1758
    %v1939 = vunpack.c.h.b16 %v1758
    %v1940 = vunpack.c.l.b16 %v1759
    %v1941 = vunpack.c.h.b16 %v1759
    %v1942 = vunpack.c.l.b16 %v1760
    %v1943 = vunpack.c.h.b16 %v1760
    %v1944 = vunpack.c.l.b16 %v1761
    %v1945 = vunpack.c.h.b16 %v1761
    %v1946 = vunpack.c.l.b16 %v1762
    %v1947 = vunpack.c.h.b16 %v1762
    %v1948 = vunpack.c.l.b16 %v1763
    %v1949 = vunpack.c.h.b16 %v1763
    %v1950 = vunpack.c.l.b16 %v1764
    %v1951 = vunpack.c.h.b16 %v1764
    %v1952 = vunpack.c.l.b16 %v1765
    %v1953 = vunpack.c.h.b16 %v1765
    %v1954 = vunpack.c.l.b16 %v1766
    %v1955 = vunpack.c.h.b16 %v1766
    %v1956 = vunpack.c.l.b16 %v1767
    %v1957 = vunpack.c.h.b16 %v1767
    %v1958 = vunpack.c.l.b16 %v1768
    %v1959 = vunpack.c.h.b16 %v1768
    %v1960 = vunpack.c.l.b16 %v1769
    %v1961 = vunpack.c.h.b16 %v1769
    %v1962 = vunpack.c.l.b16 %v1770
    %v1963 = vunpack.c.h.b16 %v1770
    %v1964 = vunpack.c.l.b16 %v1771
    %v1965 = vunpack.c.h.b16 %v1771
    %v1966 = vunpack.c.l.b16 %v1772
    %v1967 = vunpack.c.h.b16 %v1772
    %v1968 = vunpack.c.l.b16 %v1773
    %v1969 = vunpack.c.h.b16 %v1773
    %v1970 = vunpack.c.l.b16 %v1774
    %v1971 = vunpack.c.h.b16 %v1774
    %v1972 = vunpack.c.l.b16 %v1775
    %v1973 = vunpack.c.h.b16 %v1775
    %v1974 = vpack.c.b16 %v1848, %v1846
    %v1975 = vpack.c.b16 %v1849, %v1847
    %v1976 = vpack.c.b16 %v1852, %v1850
    %v1977 = vpack.c.b16 %v1853, %v1851
    %v1978 = vpack.c.b16 %v1856, %v1854
    %v1979 = vpack.c.b16 %v1857, %v1855
    %v1980 = vpack.c.b16 %v1860, %v1858
    %v1981 = vpack.c.b16 %v1861, %v1859
    %v1982 = vpack.c.b16 %v1864, %v1862
    %v1983 = vpack.c.b16 %v1865, %v1863
    %v1984 = vpack.c.b16 %v1868, %v1866
    %v1985 = vpack.c.b16 %v1869, %v1867
    %v1986 = vpack.c.b16 %v1872, %v1870
    %v1987 = vpack.c.b16 %v1873, %v1871
    %v1988 = vpack.c.b16 %v1876, %v1874
    %v1989 = vpack.c.b16 %v1877, %v1875
    %v1990 = vpack.c.b16 %v1880, %v1878
    %v1991 = vpack.c.b16 %v1881, %v1879
    %v1992 = vpack.c.b16 %v1884, %v1882
    %v1993 = vpack.c.b16 %v1885, %v1883
    %v1994 = vpack.c.b16 %v1888, %v1886
    %v1995 = vpack.c.b16 %v1889, %v1887
    %v1996 = vpack.c.b16 %v1892, %v1890
    %v1997 = vpack.c.b16 %v1893, %v1891
    %v1998 = vpack.c.b16 %v1896, %v1894
    %v1999 = vpack.c.b16 %v1897, %v1895
    %v2000 = vpack.c.b16 %v1900, %v1898
    %v2001 = vpack.c.b16 %v1901, %v1899
    %v2002 = vpack.c.b16 %v1904, %v1902
    %v2003 = vpack.c.b16 %v1905, %v1903
    %v2004 = vpack.c.b16 %v1908, %v1906
    %v2005 = vpack.c.b16 %v1909, %v1907
    %v2006 = vpack.c.b16 %v1912, %v1910
    %v2007 = vpack.c.b16 %v1913, %v1911
    %v2008 = vpack.c.b16 %v1916, %v1914
    %v2009 = vpack.c.b16 %v1917, %v1915
    %v2010 = vpack.c.b16 %v1920, %v1918
    %v2011 = vpack.c.b16 %v1921, %v1919
    %v2012 = vpack.c.b16 %v1924, %v1922
    %v2013 = vpack.c.b16 %v1925, %v1923
    %v2014 = vpack.c.b16 %v1928, %v1926
    %v2015 = vpack.c.b16 %v1929, %v1927
    %v2016 = vpack.c.b16 %v1932, %v1930
    %v2017 = vpack.c.b16 %v1933, %v1931
    %v2018 = vpack.c.b16 %v1936, %v1934
    %v2019 = vpack.c.b16 %v1937, %v1935
    %v2020 = vpack.c.b16 %v1940, %v1938
    %v2021 = vpack.c.b16 %v1941, %v1939
    %v2022 = vpack.c.b16 %v1944, %v1942
    %v2023 = vpack.c.b16 %v1945, %v1943
    %v2024 = vpack.c.b16 %v1948, %v1946
    %v2025 = vpack.c.b16 %v1949, %v1947
    %v2026 = vpack.c.b16 %v1952, %v1950
    %v2027 = vpack.c.b16 %v1953, %v1951
    %v2028 = vpack.c.b16 %v1956, %v1954
    %v2029 = vpack.c.b16 %v1957, %v1955
    %v2030 = vpack.c.b16 %v1960, %v1958
    %v2031 = vpack.c.b16 %v1961, %v1959
    %v2032 = vpack.c.b16 %v1964, %v1962
    %v2033 = vpack.c.b16 %v1965, %v1963
    %v2034 = vpack.c.b16 %v1968, %v1966
    %v2035 = vpack.c.b16 %v1969, %v1967
    %v2036 = vpack.c.b16 %v1972, %v1970
    %v2037 = vpack.c.b16 %v1973, %v1971
    %2102 = vmatpush.bf16.msra.mxu0 %v1988
    %2103 = vmatpush.bf16.msra.mxu0 %v1986
    %2104 = vmatpush.bf16.msra.mxu0 %v1984
    %2105 = vmatpush.bf16.msra.mxu0 %v1982
    %2106 = vmatpush.bf16.msra.mxu0 %v1980
    %2107 = vmatpush.bf16.msra.mxu0 %v1978
    %2108 = vmatpush.bf16.msra.mxu0 %v1976
    %2109 = vmatpush.bf16.msra.mxu0 %v1974
    %2110 = vmatmul.bf16.gmra.mxu0 %v1708
    %v2111 = vpop.f32.mrf.mxu0
    %v2112 = vadd.f32 %v1778, %v2111
    %v2113 = vpop.f32.mrf.mxu0
    %2114 = vdwg.mxu0
    %2115 = vmatpush.bf16.msra.mxu0 %v2004
    %2116 = vmatpush.bf16.msra.mxu0 %v2002
    %2117 = vmatpush.bf16.msra.mxu0 %v2000
    %2118 = vmatpush.bf16.msra.mxu0 %v1998
    %2119 = vmatpush.bf16.msra.mxu0 %v1996
    %2120 = vmatpush.bf16.msra.mxu0 %v1994
    %2121 = vmatpush.bf16.msra.mxu0 %v1992
    %2122 = vmatpush.bf16.msra.mxu0 %v1990
    %2123 = vmatmul.bf16.gmra.mxu0 %v1709
    %v2124 = vpop.f32.mrf.mxu0
    %v2125 = vadd.f32 %v2112, %v2124
    %v2126 = vpop.f32.mrf.mxu0
    %2127 = vdwg.mxu0
    %2128 = vmatpush.bf16.msra.mxu0 %v2020
    %2129 = vmatpush.bf16.msra.mxu0 %v2018
    %2130 = vmatpush.bf16.msra.mxu0 %v2016
    %2131 = vmatpush.bf16.msra.mxu0 %v2014
    %2132 = vmatpush.bf16.msra.mxu0 %v2012
    %2133 = vmatpush.bf16.msra.mxu0 %v2010
    %2134 = vmatpush.bf16.msra.mxu0 %v2008
    %2135 = vmatpush.bf16.msra.mxu0 %v2006
    %2136 = vmatmul.bf16.gmra.mxu0 %v1710
    %v2137 = vpop.f32.mrf.mxu0
    %v2138 = vadd.f32 %v2125, %v2137
    %v2139 = vpop.f32.mrf.mxu0
    %2140 = vdwg.mxu0
    %2141 = vmatpush.bf16.msra.mxu0 %v2036
    %2142 = vmatpush.bf16.msra.mxu0 %v2034
    %2143 = vmatpush.bf16.msra.mxu0 %v2032
    %2144 = vmatpush.bf16.msra.mxu0 %v2030
    %2145 = vmatpush.bf16.msra.mxu0 %v2028
    %2146 = vmatpush.bf16.msra.mxu0 %v2026
    %2147 = vmatpush.bf16.msra.mxu0 %v2024
    %2148 = vmatpush.bf16.msra.mxu0 %v2022
    %2149 = vmatmul.bf16.gmra.mxu0 %v1711
    %v2150 = vpop.f32.mrf.mxu0
    %v2151 = vadd.f32 %v2138, %v2150
    %v2152 = vpop.f32.mrf.mxu0
    %2153 = vdwg.mxu0
    %2154 = vmatpush.bf16.msra.mxu0 %v1989
    %2155 = vmatpush.bf16.msra.mxu0 %v1987
    %2156 = vmatpush.bf16.msra.mxu0 %v1985
    %2157 = vmatpush.bf16.msra.mxu0 %v1983
    %2158 = vmatpush.bf16.msra.mxu0 %v1981
    %2159 = vmatpush.bf16.msra.mxu0 %v1979
    %2160 = vmatpush.bf16.msra.mxu0 %v1977
    %2161 = vmatpush.bf16.msra.mxu0 %v1975
    %2162 = vmatmul.bf16.gmra.mxu0 %v1708
    %v2163 = vpop.f32.mrf.mxu0
    %v2164 = vadd.f32 %v1779, %v2163
    %v2165 = vpop.f32.mrf.mxu0
    %2166 = vdwg.mxu0
    %2167 = vmatpush.bf16.msra.mxu0 %v2005
    %2168 = vmatpush.bf16.msra.mxu0 %v2003
    %2169 = vmatpush.bf16.msra.mxu0 %v2001
    %2170 = vmatpush.bf16.msra.mxu0 %v1999
    %2171 = vmatpush.bf16.msra.mxu0 %v1997
    %2172 = vmatpush.bf16.msra.mxu0 %v1995
    %2173 = vmatpush.bf16.msra.mxu0 %v1993
    %2174 = vmatpush.bf16.msra.mxu0 %v1991
    %2175 = vmatmul.bf16.gmra.mxu0 %v1709
    %v2176 = vpop.f32.mrf.mxu0
    %v2177 = vadd.f32 %v2164, %v2176
    %v2178 = vpop.f32.mrf.mxu0
    %2179 = vdwg.mxu0
    %2180 = vmatpush.bf16.msra.mxu0 %v2021
    %2181 = vmatpush.bf16.msra.mxu0 %v2019
    %2182 = vmatpush.bf16.msra.mxu0 %v2017
    %2183 = vmatpush.bf16.msra.mxu0 %v2015
    %2184 = vmatpush.bf16.msra.mxu0 %v2013
    %2185 = vmatpush.bf16.msra.mxu0 %v2011
    %2186 = vmatpush.bf16.msra.mxu0 %v2009
    %2187 = vmatpush.bf16.msra.mxu0 %v2007
    %2188 = vmatmul.bf16.gmra.mxu0 %v1710
    %v2189 = vpop.f32.mrf.mxu0
    %v2190 = vadd.f32 %v2177, %v2189
    %v2191 = vpop.f32.mrf.mxu0
    %2192 = vdwg.mxu0
    %2193 = vmatpush.bf16.msra.mxu0 %v2037
    %2194 = vmatpush.bf16.msra.mxu0 %v2035
    %2195 = vmatpush.bf16.msra.mxu0 %v2033
    %2196 = vmatpush.bf16.msra.mxu0 %v2031
    %2197 = vmatpush.bf16.msra.mxu0 %v2029
    %2198 = vmatpush.bf16.msra.mxu0 %v2027
    %2199 = vmatpush.bf16.msra.mxu0 %v2025
    %2200 = vmatpush.bf16.msra.mxu0 %v2023
    %2201 = vmatmul.bf16.gmra.mxu0 %v1711
    %v2202 = vpop.f32.mrf.mxu0
    %v2203 = vadd.f32 %v2190, %v2202
    %v2204 = vpop.f32.mrf.mxu0
    %2205 = vdwg.mxu0
    %v2206 = vmax.f32 %v2151, 0.0
    %v2207 = vmax.f32 %v2203, 0.0
    %v2208 = vld [vmem:[%s7] sm:$0x3]
    %v2210 = vperm.slane %v2208, 0
    %v2211 = vperm.slane %v2208, 1
    %v2214 = vmul.f32 %v2206, %v2210
    %v2215 = vmul.f32 %v2207, %v2211
    %v2216 = vadd.f32 %v2214, %v2215
    %2217 = vadd.xlane.f32.xlu0 %v2216
    %v2218 = vpop.xlane.xlu0 %2217
    %v2219 = vld [vmem:[#allocation2] sm:$0x1]
    %v2221 = vperm.slane %v2219, 0
    %v2223 = vadd.f32 %v2218, %v2221
    %v2224 = vsub.f32 0.0, %v2223
    %v2225 = vmul.f32 %v2224, 1.442695
    %v2226 = vpow.pop %v2225
    %v2227 = vadd.f32 %v2226, 1.0
    %v2228 = vrcp.pop %v2227
    %v2229 = vpack.c.bf16 %v2228, %v2228
    %2231 = vset.pattern.permute.xlu0 0
    %2232 = vperm.xlu0 %2231, %v2229
    %v2233 = vpop.permute.xlu0 %2232
    %v2236 = vunpack.c.l.s4 839922192
    %v2237 = vunpack.c.0.s8 %v2236
    %v2238 = vperm.slane %v2233, %v2237
    %2239 = vst [vmem:[%s9] sm:$0xf] %v2238
    // Predicated region
    $region42: #{discriminator_forward.1} parent=1 // pred_check
      _
    $region43: #{discriminator_forward.1} parent=1 // pred_check_branch
      %2241 = sbr.rel (0) target = $region45
    $region44: #{discriminator_forward.1} parent=1 // pred_region
      _
    $region45: #{discriminator_forward.1} parent=1 // pred_fallthru
      _
    // Predicated region
    $region46: #{discriminator_forward.1} parent=1 // pred_check
      _
    $region47: #{discriminator_forward.1} parent=1 // pred_check_branch
      %2243 = sbr.rel (0) target = $region49
    $region48: #{discriminator_forward.1} parent=1 // pred_region
      _
    $region49: #{discriminator_forward.1} parent=1 // pred_fallthru
      _
    %2244 = vsyncpa [#allocation4], 1

</llo_original>
